<compile_context>
chip_gen: v5e
topology: v5e:2x2
jax: 0.10.0
libtpu: 0.0.40
codegen_flags: <defaults>
</compile_context>

<pallas_src>
import jax
import jax.numpy as jnp
from jax import lax
from jax.experimental import pallas as pl
from jax.experimental.pallas import tpu as pltpu

EMBED = 25      # embed_size
HID = 25        # GRU hidden size (== embed_size in the module)
HP = 128        # per-gate lane padding (one full lane tile -> aligned gate slices)
UNROLL_T = 16   # fully unroll the time loop up to this sequence length ...
UNROLL_BB = 32  # ... but only when the batch block is small (vreg pressure)


def gru_classifier_kernel(x_ref,      # (T*BB, E)    bf16, time-major flattened input
                          wi_ref,     # (E, 3*HP)    bf16 fused input weights; gate g at lanes [g*HP, g*HP+HID)
                          wh_ref,     # (HID, 3*HP)  bf16 fused hidden weights, same lane layout
                          bx_ref,     # (1, 3*HP)    f32 biases folded into x-proj (r/z: b_i+b_h, n: b_i)
                          bhn_ref,    # (1, HID)     f32 b_hn (must stay inside r*(...))
                          wl_ref,     # (HID, 1)     f32 Linear weight (transposed)
                          bl_ref,     # (1, 1)       f32 Linear bias
                          tgt_ref,    # (BB, 1)      target score (0/1)
                          msk_ref,    # (BB, 1)      1.0 for real rows, 0.0 for batch padding
                          seq_ref,    # (T*BB, HID)  out: all GRU hidden states (time-major flattened)
                          lsum_ref,   # (1, 1, 1)    out: sum of per-row BCE losses in this block
                          csum_ref,   # (1, 1, 1)    out: number of correct predictions in this block
                          nsum_ref,   # (1, 1, 1)    out: number of valid rows in this block
                          xp_scr):    # (T*BB, 3*HP) f32 scratch: precomputed input projections
    BB = tgt_ref.shape[0]
    TB = x_ref.shape[0]
    T = TB // BB

    # Loop-invariant loads, hoisted once.  Bias rows are NOT materialized to
    # (BB, N); (1, N) + (BB, N) is a free sublane broadcast on the VPU.
    wi = wi_ref[...]                                           # (E, 3*HP)   bf16
    wh = wh_ref[...]                                           # (HID, 3*HP) bf16
    bx = bx_ref[...]                                           # (1, 3*HP)   f32
    bhn = bhn_ref[...]                                         # (1, HID)    f32

    # ---- phase 1: ONE fused input-projection matmul for all timesteps --------
    # (T*BB, E) @ (E, 3*HP) -> (T*BB, 3*HP), f32 accumulation; no dependence on h.
    xp_scr[...] = jnp.dot(x_ref[...], wi,
                          preferred_element_type=jnp.float32) + bx

    # ---- phase 2: serial recurrence; h lives in vregs, one hidden matmul/step --
    h0 = jnp.zeros((BB, HID), jnp.float32)                     # PyTorch default h_0 = 0

    def step(t, h):
        off = t * BB
        if not isinstance(off, int):                           # dynamic t (fori_loop path)
            off = pl.multiple_of(off, BB)
        xp_t = xp_scr[pl.ds(off, BB), :]                        # (BB, 3*HP) f32
        gh = jnp.dot(h.astype(jnp.bfloat16), wh,
                     preferred_element_type=jnp.float32)        # (BB, 3*HP) fused gates
        # PyTorch GRU gate order: r, z, n; gate g lives at lanes [g*HP, g*HP + HID)
        r = jax.nn.sigmoid(xp_t[:, 0:HID] + gh[:, 0:HID])
        z = jax.nn.sigmoid(xp_t[:, HP:HP + HID] + gh[:, HP:HP + HID])
        n = jnp.tanh(xp_t[:, 2 * HP:2 * HP + HID]
                     + r * (gh[:, 2 * HP:2 * HP + HID] + bhn))
        h_new = (1.0 - z) * n + z * h
        seq_ref[pl.ds(off, BB), :] = h_new                      # hidden state for timestep t
        return h_new

    if T <= UNROLL_T and BB <= UNROLL_BB:
        h = h0
        for t in range(T):                                      # full unroll: static indices
            h = step(t, h)
    else:
        h = lax.fori_loop(0, T, step, h0, unroll=2)             # bounded live ranges

    # ---- phase 3: classifier head + masked loss / accuracy partial sums -------
    y = jnp.dot(h, wl_ref[...],
                preferred_element_type=jnp.float32) + bl_ref[...]   # (BB, 1) logits
    t_lab = tgt_ref[...]
    m = msk_ref[...]

    # BCEWithLogitsLoss (numerically-stable form); masked sums, mean taken in glue.
    per = jnp.maximum(y, 0.0) - y * t_lab + jnp.log1p(jnp.exp(-jnp.abs(y)))
    pred = (y > 0.0).astype(jnp.float32)                        # == sigmoid(y) > 0.5
    correct = (pred == t_lab).astype(jnp.float32)

    lsum_ref[0] = jnp.sum(jnp.where(m > 0.0, per, 0.0), keepdims=True)
    csum_ref[0] = jnp.sum(jnp.where(m > 0.0, correct, 0.0), keepdims=True)
    nsum_ref[0] = jnp.sum(m, keepdims=True)


def init_params(key, vocab_size):
    ks = jax.random.split(key, 6)
    scale = 0.1
    embed = jax.random.normal(ks[0], (vocab_size, EMBED), jnp.float32)
    # PyTorch native GRU parameter shapes: (3H, E), (3H, H), (3H,), (3H,)
    w_ih = scale * jax.random.normal(ks[1], (3 * HID, EMBED), jnp.float32)
    w_hh = scale * jax.random.normal(ks[2], (3 * HID, HID), jnp.float32)
    b_ih = scale * jax.random.normal(ks[3], (3 * HID,), jnp.float32)
    b_hh = scale * jax.random.normal(ks[4], (3 * HID,), jnp.float32)
    # Linear(H -> 1)
    w_l = scale * jax.random.normal(ks[5], (1, HID), jnp.float32)
    b_l = jnp.zeros((1,), jnp.float32)
    return dict(embed=embed, w_ih=w_ih, w_hh=w_hh, b_ih=b_ih, b_hh=b_hh,
                w_l=w_l, b_l=b_l)


def _repack_gru_params(params):
    """Repack PyTorch-native GRU/Linear params into the fused, gate-padded,
    right-multiply layout consumed by the kernel (matmul operands in bf16)."""
    w_ih = params['w_ih'].reshape(3, HID, EMBED)   # gate order: r, z, n
    w_hh = params['w_hh'].reshape(3, HID, HID)
    b_ih = params['b_ih'].reshape(3, HID)
    b_hh = params['b_hh'].reshape(3, HID)

    def pad_cols(w):   # (in, HID) -> (in, HP), zero-padded lanes
        return jnp.pad(w, ((0, 0), (0, HP - HID)))

    def pad_bias(b):   # (HID,) -> (HP,)
        return jnp.pad(b, (0, HP - HID))

    wi = jnp.concatenate([pad_cols(w_ih[g].T) for g in range(3)],
                         axis=1).astype(jnp.bfloat16)                  # (E, 3*HP)
    wh = jnp.concatenate([pad_cols(w_hh[g].T) for g in range(3)],
                         axis=1).astype(jnp.bfloat16)                  # (HID, 3*HP)
    # Biases folded into the x-projection: r/z gates get b_ih + b_hh, the n gate
    # gets b_ih only (its b_hh must stay inside the r*(h@W_hn + b_hn) term).
    # Biases stay f32 (added to the f32 matmul accumulator).
    bx = jnp.concatenate([pad_bias(b_ih[0] + b_hh[0]),
                          pad_bias(b_ih[1] + b_hh[1]),
                          pad_bias(b_ih[2])]).reshape(1, 3 * HP)
    bhn = b_hh[2].reshape(1, HID)
    wl = params['w_l'].T                         # (HID, 1)
    bl = params['b_l'].reshape(1, 1)
    return wi, wh, bx, bhn, wl, bl


def _choose_block_b(bp8, target):
    """Pick a batch block: as large as the target allows, multiple of 8, and
    split into >=2 blocks when possible so both v7x TensorCores get work."""
    bb = max(8, (min(target, bp8) // 8) * 8)
    if bp8 // bb < 2 and bp8 >= 16:
        bb = max(8, ((bp8 // 2) // 8) * 8)
    return bb


def _vmem_limit_bytes(T, bb):
    """VMEM budget from the actual (lane/sublane-padded) block shapes; x and seq
    blocks are double-buffered by the pipeline, xp_scr is not."""
    lanes = lambda n: -(-n // 128) * 128
    subs = lambda n, s: -(-n // s) * s
    x_blk = subs(T * bb, 16) * lanes(EMBED) * 2            # bf16 input block
    seq_blk = subs(T * bb, 8) * lanes(HID) * 4             # f32 output block
    xp = subs(T * bb, 8) * lanes(3 * HP) * 4               # f32 scratch
    weights = ((subs(EMBED, 16) + subs(HID, 16)) * lanes(3 * HP) * 2
               + 8 * lanes(3 * HP) * 4 + 8 * lanes(HID) * 4
               + subs(HID, 8) * 128 * 4 + 8 * 128 * 4)
    small = subs(bb, 8) * 128 * 4 * 2 + 3 * 8 * 128 * 4
    need = 2 * (x_blk + seq_blk) + xp + 2 * (weights + small) + (4 << 20)
    try:
        cap = int(pltpu.get_tpu_info().vmem_capacity_bytes * 0.85)   # 64 MiB on v7x, 128 MiB v5e/v6e
    except Exception:
        cap = 100 << 20
    cap = min(cap, 100 << 20)
    return int(min(max(need, 32 << 20), cap))


def classifier_forward(tokens, score, params, *, target_block_b=128):
    """tokens: (B, T) int32, score: (B,) float32 in {0, 1}."""
    B, T = tokens.shape
    bp8 = -(-B // 8) * 8
    block_b = _choose_block_b(bp8, target_block_b)
    Bp = -(-bp8 // block_b) * block_b                            # pad batch to a block multiple
    G = Bp // block_b

    # --- glue: transpose the small int32 token matrix BEFORE the embedding
    #     gather so the float activations are produced time-major directly;
    #     pre-block per grid step so each block's DMA is one contiguous slab.
    tok_tb = tokens.T                                            # (T, B) int32
    if Bp != B:
        tok_tb = jnp.pad(tok_tb, ((0, 0), (0, Bp - B)))
    x_tbe = params['embed'][tok_tb].astype(jnp.bfloat16)         # (T, Bp, E) bf16
    x_blk = (x_tbe.reshape(T, G, block_b, EMBED)
             .transpose(1, 0, 2, 3)
             .reshape(G, T * block_b, EMBED))                    # (G, T*block_b, E)

    wi, wh, bx, bhn, wl, bl = _repack_gru_params(params)

    tgt = score.astype(jnp.float32).reshape(B, 1)
    msk = jnp.ones((B, 1), jnp.float32)
    if Bp != B:
        tgt = jnp.pad(tgt, ((0, Bp - B), (0, 0)))
        msk = jnp.pad(msk, ((0, Bp - B), (0, 0)))

    grid_spec = pltpu.PrefetchScalarGridSpec(
        num_scalar_prefetch=0,
        grid=(G,),
        in_specs=[
            pl.BlockSpec((pl.Squeezed(), T * block_b, EMBED), lambda i: (i, 0, 0)),  # x slab
            pl.BlockSpec((EMBED, 3 * HP), lambda i: (0, 0)),          # fused W_i (bf16)
            pl.BlockSpec((HID, 3 * HP), lambda i: (0, 0)),            # fused W_h (bf16)
            pl.BlockSpec((1, 3 * HP), lambda i: (0, 0)),              # folded bias
            pl.BlockSpec((1, HID), lambda i: (0, 0)),                 # b_hn
            pl.BlockSpec((HID, 1), lambda i: (0, 0)),                 # Linear W
            pl.BlockSpec((1, 1), lambda i: (0, 0)),                   # Linear b
            pl.BlockSpec((block_b, 1), lambda i: (i, 0)),             # target
            pl.BlockSpec((block_b, 1), lambda i: (i, 0)),             # valid mask
        ],
        out_specs=[
            pl.BlockSpec((pl.Squeezed(), T * block_b, HID), lambda i: (i, 0, 0)),    # seq hidden
            pl.BlockSpec((1, 1, 1), lambda i: (i, 0, 0)),             # loss partial sums
            pl.BlockSpec((1, 1, 1), lambda i: (i, 0, 0)),             # correct counts
            pl.BlockSpec((1, 1, 1), lambda i: (i, 0, 0)),             # valid-row counts
        ],
        scratch_shapes=[pltpu.VMEM((T * block_b, 3 * HP), jnp.float32)],
    )

    seq_blk, lsum, csum, nsum = pl.pallas_call(
        gru_classifier_kernel,
        out_shape=(
            jax.ShapeDtypeStruct((G, T * block_b, HID), jnp.float32),
            jax.ShapeDtypeStruct((G, 1, 1), jnp.float32),
            jax.ShapeDtypeStruct((G, 1, 1), jnp.float32),
            jax.ShapeDtypeStruct((G, 1, 1), jnp.float32),
        ),
        grid_spec=grid_spec,
        compiler_params=pltpu.CompilerParams(
            dimension_semantics=("parallel",),      # batch blocks are independent
            vmem_limit_bytes=_vmem_limit_bytes(T, block_b),
        ),
    )(x_blk, wi, wh, bx, bhn, wl, bl, tgt, msk)

    # Back to PyTorch's batch_first (B, T, H) layout; negligible at these shapes.
    x_out = (seq_blk.reshape(G, T, block_b, HID)
             .transpose(0, 2, 1, 3)
             .reshape(Bp, T, HID))[:B]

    n_valid = jnp.sum(nsum)
    loss = jnp.sum(lsum) / n_valid
    acc = jnp.sum(csum) / n_valid
    return {'score': x_out, 'loss': loss, 'acc': acc}


def classifier_forward_ref(tokens, score, params):
    """Pure-JAX reference mirroring the PyTorch forward.  Matmul inputs are cast
    to bf16 (f32 accumulation) exactly like the kernel, so the comparison stays
    tight; a full-f32 reference agrees with this one to ~1e-2."""
    x = params['embed'][tokens].astype(jnp.bfloat16)               # (B, T, E)
    wi = jnp.transpose(params['w_ih'].reshape(3, HID, EMBED), (0, 2, 1)).astype(jnp.bfloat16)
    wh = jnp.transpose(params['w_hh'].reshape(3, HID, HID), (0, 2, 1)).astype(jnp.bfloat16)
    bi = params['b_ih'].reshape(3, 1, HID)
    bh = params['b_hh'].reshape(3, 1, HID)

    def step(h, x_t):
        hb = h.astype(jnp.bfloat16)
        gi = [jnp.dot(x_t, wi[g], preferred_element_type=jnp.float32) for g in range(3)]
        gh = [jnp.dot(hb, wh[g], preferred_element_type=jnp.float32) for g in range(3)]
        r = jax.nn.sigmoid(gi[0] + (bi[0] + bh[0]) + gh[0])
        z = jax.nn.sigmoid(gi[1] + (bi[1] + bh[1]) + gh[1])
        n = jnp.tanh(gi[2] + bi[2] + r * (gh[2] + bh[2]))
        h_new = (1.0 - z) * n + z * h
        return h_new, h_new

    B = tokens.shape[0]
    h0 = jnp.zeros((B, HID), jnp.float32)
    h_fin, seq = lax.scan(step, h0, jnp.transpose(x, (1, 0, 2)))
    y = (h_fin @ params['w_l'].T + params['b_l']).squeeze(-1)
    t = score.astype(jnp.float32)
    loss = jnp.mean(jnp.maximum(y, 0.0) - y * t + jnp.log1p(jnp.exp(-jnp.abs(y))))
    acc = jnp.mean(((jax.nn.sigmoid(y) > 0.5).astype(jnp.float32) == t)
                   .astype(jnp.float32))
    return {'score': jnp.transpose(seq, (1, 0, 2)), 'loss': loss, 'acc': acc}


if __name__ == "__main__":
    key = jax.random.PRNGKey(0)
    k_par, k_tok, k_lab = jax.random.split(key, 3)

    B, T, VOCAB = 8, 8, 50          # B multiple of 8 -> full f32 sublane utilization
    params = init_params(k_par, VOCAB)
    review_vectors = jax.random.randint(k_tok, (B, T), 0, VOCAB, dtype=jnp.int32)
    score = jax.random.bernoulli(k_lab, 0.5, (B,)).astype(jnp.float32)

    out = classifier_forward(review_vectors, score, params)
    out = jax.tree_util.tree_map(jax.block_until_ready, out)

    ref = classifier_forward_ref(review_vectors, score, params)
    assert out['score'].shape == (B, T, HID)
    assert jnp.allclose(out['score'], ref['score'], atol=2e-3, rtol=2e-3)
    assert jnp.allclose(out['loss'], ref['loss'], atol=2e-3, rtol=2e-3)
    assert jnp.allclose(out['acc'], ref['acc'], atol=1e-6)

    print("KERNEL_OK")
</pallas_src>

<mosaic_0001>
module attributes {stable_mosaic.version = 11 : i64} {
  func.func @gru_classifier_kernel(%arg0: i32, %arg1: memref<1x64x25xbf16, #tpu.memory_space<vmem>>, %arg2: memref<25x384xbf16, #tpu.memory_space<vmem>>, %arg3: memref<25x384xbf16, #tpu.memory_space<vmem>>, %arg4: memref<1x384xf32, #tpu.memory_space<vmem>>, %arg5: memref<1x25xf32, #tpu.memory_space<vmem>>, %arg6: memref<25x1xf32, #tpu.memory_space<vmem>>, %arg7: memref<1x1xf32, #tpu.memory_space<vmem>>, %arg8: memref<8x1xf32, #tpu.memory_space<vmem>>, %arg9: memref<8x1xf32, #tpu.memory_space<vmem>>, %arg10: memref<1x64x25xf32, #tpu.memory_space<vmem>>, %arg11: memref<1x1x1xf32, #tpu.memory_space<vmem>>, %arg12: memref<1x1x1xf32, #tpu.memory_space<vmem>>, %arg13: memref<1x1x1xf32, #tpu.memory_space<vmem>>, %arg14: memref<64x384xf32, #tpu.memory_space<vmem>>) attributes {dimension_semantics = [#tpu.dimension_semantics<parallel>], iteration_bounds = array<i64: 1>, scalar_prefetch = 0 : i64, scratch_operands = 1 : i64, tpu.core_type = #tpu.core_type<tc>, window_params = [{transform_indices = @transform_0, window_bounds = array<i64: 1, 64, 25>}, {pipeline_mode = #tpu.pipeline_mode<synchronous>, transform_indices = @transform_1, window_bounds = array<i64: 25, 384>}, {pipeline_mode = #tpu.pipeline_mode<synchronous>, transform_indices = @transform_2, window_bounds = array<i64: 25, 384>}, {pipeline_mode = #tpu.pipeline_mode<synchronous>, transform_indices = @transform_3, window_bounds = array<i64: 1, 384>}, {pipeline_mode = #tpu.pipeline_mode<synchronous>, transform_indices = @transform_4, window_bounds = array<i64: 1, 25>}, {pipeline_mode = #tpu.pipeline_mode<synchronous>, transform_indices = @transform_5, window_bounds = array<i64: 25, 1>}, {pipeline_mode = #tpu.pipeline_mode<synchronous>, transform_indices = @transform_6, window_bounds = array<i64: 1, 1>}, {transform_indices = @transform_7, window_bounds = array<i64: 8, 1>}, {transform_indices = @transform_8, window_bounds = array<i64: 8, 1>}, {transform_indices = @transform_9, window_bounds = array<i64: 1, 64, 25>}, {transform_indices = @transform_10, window_bounds = array<i64: 1, 1, 1>}, {transform_indices = @transform_11, window_bounds = array<i64: 1, 1, 1>}, {transform_indices = @transform_12, window_bounds = array<i64: 1, 1, 1>}]} {
    %c0 = arith.constant 0 : index
    %c0_0 = arith.constant 0 : index
    %0 = vector.load %arg2[%c0, %c0_0] : memref<25x384xbf16, #tpu.memory_space<vmem>>, vector<25x384xbf16>
    %c0_1 = arith.constant 0 : index
    %c0_2 = arith.constant 0 : index
    %1 = vector.load %arg3[%c0_1, %c0_2] : memref<25x384xbf16, #tpu.memory_space<vmem>>, vector<25x384xbf16>
    %c0_3 = arith.constant 0 : index
    %c0_4 = arith.constant 0 : index
    %2 = vector.load %arg4[%c0_3, %c0_4] : memref<1x384xf32, #tpu.memory_space<vmem>>, vector<1x384xf32>
    %c0_5 = arith.constant 0 : index
    %c0_6 = arith.constant 0 : index
    %3 = vector.load %arg5[%c0_5, %c0_6] : memref<1x25xf32, #tpu.memory_space<vmem>>, vector<1x25xf32>
    %c0_7 = arith.constant 0 : index
    %c0_8 = arith.constant 0 : index
    %c0_9 = arith.constant 0 : index
    %4 = vector.load %arg1[%c0_7, %c0_8, %c0_9] : memref<1x64x25xbf16, #tpu.memory_space<vmem>>, vector<1x64x25xbf16>
    %5 = vector.shape_cast %4 : vector<1x64x25xbf16> to vector<64x25xbf16>
    %cst = arith.constant dense<0.000000e+00> : vector<64x384xf32>
    %6 = tpu.matmul %5, %0, %cst {dimension_numbers = #tpu.dot_dimension_numbers<[1], [0], [0], [1], [0, 0, 1, 1], [], []>} : vector<64x25xbf16>, vector<25x384xbf16>, vector<64x384xf32> -> vector<64x384xf32>
    %7 = vector.broadcast %2 : vector<1x384xf32> to vector<64x384xf32>
    %8 = arith.addf %6, %7 : vector<64x384xf32>
    %c0_10 = arith.constant 0 : index
    %c0_11 = arith.constant 0 : index
    %9 = vector.load %arg14[%c0_10, %c0_11] : memref<64x384xf32, #tpu.memory_space<vmem>>, vector<64x384xf32>
    tpu.vector_store %arg14[%c0_10, %c0_11], %8 {strides = array<i32>} : memref<64x384xf32, #tpu.memory_space<vmem>>, vector<64x384xf32>,
    %cst_12 = arith.constant 0.000000e+00 : f32
    %10 = vector.broadcast %cst_12 : f32 to vector<8x25xf32>
    %c0_13 = arith.constant 0 : index
    %c0_14 = arith.constant 0 : index
    %11 = vector.load %arg14[%c0_13, %c0_14] : memref<64x384xf32, #tpu.memory_space<vmem>>, vector<8x384xf32>
    %12 = arith.truncf %10 : vector<8x25xf32> to vector<8x25xbf16>
    %cst_15 = arith.constant dense<0.000000e+00> : vector<8x384xf32>
    %13 = tpu.matmul %12, %1, %cst_15 {dimension_numbers = #tpu.dot_dimension_numbers<[1], [0], [0], [1], [0, 0, 1, 1], [], []>} : vector<8x25xbf16>, vector<25x384xbf16>, vector<8x384xf32> -> vector<8x384xf32>
    %14 = vector.extract_strided_slice %11 {offsets = [0, 0], sizes = [8, 25], strides = [1, 1]} : vector<8x384xf32> to vector<8x25xf32>
    %15 = vector.extract_strided_slice %13 {offsets = [0, 0], sizes = [8, 25], strides = [1, 1]} : vector<8x384xf32> to vector<8x25xf32>
    %16 = arith.addf %14, %15 : vector<8x25xf32>
    %17 = arith.negf %16 : vector<8x25xf32>
    %18 = math.exp %17 : vector<8x25xf32>
    %cst_16 = arith.constant 1.000000e+00 : f32
    %19 = vector.broadcast %cst_16 : f32 to vector<8x25xf32>
    %20 = arith.addf %19, %18 : vector<8x25xf32>
    %21 = arith.divf %19, %20 : vector<8x25xf32>
    %22 = vector.extract_strided_slice %11 {offsets = [0, 128], sizes = [8, 25], strides = [1, 1]} : vector<8x384xf32> to vector<8x25xf32>
    %23 = vector.extract_strided_slice %13 {offsets = [0, 128], sizes = [8, 25], strides = [1, 1]} : vector<8x384xf32> to vector<8x25xf32>
    %24 = arith.addf %22, %23 : vector<8x25xf32>
    %25 = arith.negf %24 : vector<8x25xf32>
    %26 = math.exp %25 : vector<8x25xf32>
    %cst_17 = arith.constant 1.000000e+00 : f32
    %27 = vector.broadcast %cst_17 : f32 to vector<8x25xf32>
    %28 = arith.addf %27, %26 : vector<8x25xf32>
    %29 = arith.divf %27, %28 : vector<8x25xf32>
    %30 = vector.extract_strided_slice %11 {offsets = [0, 256], sizes = [8, 25], strides = [1, 1]} : vector<8x384xf32> to vector<8x25xf32>
    %31 = vector.extract_strided_slice %13 {offsets = [0, 256], sizes = [8, 25], strides = [1, 1]} : vector<8x384xf32> to vector<8x25xf32>
    %32 = vector.broadcast %3 : vector<1x25xf32> to vector<8x25xf32>
    %33 = arith.addf %31, %32 : vector<8x25xf32>
    %34 = arith.mulf %21, %33 : vector<8x25xf32>
    %35 = arith.addf %30, %34 : vector<8x25xf32>
    %36 = math.tanh %35 : vector<8x25xf32>
    %cst_18 = arith.constant 1.000000e+00 : f32
    %37 = vector.broadcast %cst_18 : f32 to vector<8x25xf32>
    %38 = arith.subf %37, %29 : vector<8x25xf32>
    %39 = arith.mulf %38, %36 : vector<8x25xf32>
    %40 = arith.mulf %29, %10 : vector<8x25xf32>
    %41 = arith.addf %39, %40 : vector<8x25xf32>
    %c0_19 = arith.constant 0 : index
    %c0_20 = arith.constant 0 : index
    %c0_21 = arith.constant 0 : index
    %42 = vector.load %arg10[%c0_19, %c0_20, %c0_21] : memref<1x64x25xf32, #tpu.memory_space<vmem>>, vector<1x8x25xf32>
    %43 = vector.shape_cast %42 : vector<1x8x25xf32> to vector<8x25xf32>
    %44 = vector.shape_cast %41 : vector<8x25xf32> to vector<1x8x25xf32>
    tpu.vector_store %arg10[%c0_19, %c0_20, %c0_21], %44 {strides = array<i32>} : memref<1x64x25xf32, #tpu.memory_space<vmem>>, vector<1x8x25xf32>,
    %c8 = arith.constant 8 : index
    %c0_22 = arith.constant 0 : index
    %45 = vector.load %arg14[%c8, %c0_22] : memref<64x384xf32, #tpu.memory_space<vmem>>, vector<8x384xf32>
    %46 = arith.truncf %41 : vector<8x25xf32> to vector<8x25xbf16>
    %cst_23 = arith.constant dense<0.000000e+00> : vector<8x384xf32>
    %47 = tpu.matmul %46, %1, %cst_23 {dimension_numbers = #tpu.dot_dimension_numbers<[1], [0], [0], [1], [0, 0, 1, 1], [], []>} : vector<8x25xbf16>, vector<25x384xbf16>, vector<8x384xf32> -> vector<8x384xf32>
    %48 = vector.extract_strided_slice %45 {offsets = [0, 0], sizes = [8, 25], strides = [1, 1]} : vector<8x384xf32> to vector<8x25xf32>
    %49 = vector.extract_strided_slice %47 {offsets = [0, 0], sizes = [8, 25], strides = [1, 1]} : vector<8x384xf32> to vector<8x25xf32>
    %50 = arith.addf %48, %49 : vector<8x25xf32>
    %51 = arith.negf %50 : vector<8x25xf32>
    %52 = math.exp %51 : vector<8x25xf32>
    %cst_24 = arith.constant 1.000000e+00 : f32
    %53 = vector.broadcast %cst_24 : f32 to vector<8x25xf32>
    %54 = arith.addf %53, %52 : vector<8x25xf32>
    %55 = arith.divf %53, %54 : vector<8x25xf32>
    %56 = vector.extract_strided_slice %45 {offsets = [0, 128], sizes = [8, 25], strides = [1, 1]} : vector<8x384xf32> to vector<8x25xf32>
    %57 = vector.extract_strided_slice %47 {offsets = [0, 128], sizes = [8, 25], strides = [1, 1]} : vector<8x384xf32> to vector<8x25xf32>
    %58 = arith.addf %56, %57 : vector<8x25xf32>
    %59 = arith.negf %58 : vector<8x25xf32>
    %60 = math.exp %59 : vector<8x25xf32>
    %cst_25 = arith.constant 1.000000e+00 : f32
    %61 = vector.broadcast %cst_25 : f32 to vector<8x25xf32>
    %62 = arith.addf %61, %60 : vector<8x25xf32>
    %63 = arith.divf %61, %62 : vector<8x25xf32>
    %64 = vector.extract_strided_slice %45 {offsets = [0, 256], sizes = [8, 25], strides = [1, 1]} : vector<8x384xf32> to vector<8x25xf32>
    %65 = vector.extract_strided_slice %47 {offsets = [0, 256], sizes = [8, 25], strides = [1, 1]} : vector<8x384xf32> to vector<8x25xf32>
    %66 = vector.broadcast %3 : vector<1x25xf32> to vector<8x25xf32>
    %67 = arith.addf %65, %66 : vector<8x25xf32>
    %68 = arith.mulf %55, %67 : vector<8x25xf32>
    %69 = arith.addf %64, %68 : vector<8x25xf32>
    %70 = math.tanh %69 : vector<8x25xf32>
    %cst_26 = arith.constant 1.000000e+00 : f32
    %71 = vector.broadcast %cst_26 : f32 to vector<8x25xf32>
    %72 = arith.subf %71, %63 : vector<8x25xf32>
    %73 = arith.mulf %72, %70 : vector<8x25xf32>
    %74 = arith.mulf %63, %41 : vector<8x25xf32>
    %75 = arith.addf %73, %74 : vector<8x25xf32>
    %c0_27 = arith.constant 0 : index
    %c8_28 = arith.constant 8 : index
    %c0_29 = arith.constant 0 : index
    %76 = vector.load %arg10[%c0_27, %c8_28, %c0_29] : memref<1x64x25xf32, #tpu.memory_space<vmem>>, vector<1x8x25xf32>
    %77 = vector.shape_cast %76 : vector<1x8x25xf32> to vector<8x25xf32>
    %78 = vector.shape_cast %75 : vector<8x25xf32> to vector<1x8x25xf32>
    tpu.vector_store %arg10[%c0_27, %c8_28, %c0_29], %78 {strides = array<i32>} : memref<1x64x25xf32, #tpu.memory_space<vmem>>, vector<1x8x25xf32>,
    %c16 = arith.constant 16 : index
    %c0_30 = arith.constant 0 : index
    %79 = vector.load %arg14[%c16, %c0_30] : memref<64x384xf32, #tpu.memory_space<vmem>>, vector<8x384xf32>
    %80 = arith.truncf %75 : vector<8x25xf32> to vector<8x25xbf16>
    %cst_31 = arith.constant dense<0.000000e+00> : vector<8x384xf32>
    %81 = tpu.matmul %80, %1, %cst_31 {dimension_numbers = #tpu.dot_dimension_numbers<[1], [0], [0], [1], [0, 0, 1, 1], [], []>} : vector<8x25xbf16>, vector<25x384xbf16>, vector<8x384xf32> -> vector<8x384xf32>
    %82 = vector.extract_strided_slice %79 {offsets = [0, 0], sizes = [8, 25], strides = [1, 1]} : vector<8x384xf32> to vector<8x25xf32>
    %83 = vector.extract_strided_slice %81 {offsets = [0, 0], sizes = [8, 25], strides = [1, 1]} : vector<8x384xf32> to vector<8x25xf32>
    %84 = arith.addf %82, %83 : vector<8x25xf32>
    %85 = arith.negf %84 : vector<8x25xf32>
    %86 = math.exp %85 : vector<8x25xf32>
    %cst_32 = arith.constant 1.000000e+00 : f32
    %87 = vector.broadcast %cst_32 : f32 to vector<8x25xf32>
    %88 = arith.addf %87, %86 : vector<8x25xf32>
    %89 = arith.divf %87, %88 : vector<8x25xf32>
    %90 = vector.extract_strided_slice %79 {offsets = [0, 128], sizes = [8, 25], strides = [1, 1]} : vector<8x384xf32> to vector<8x25xf32>
    %91 = vector.extract_strided_slice %81 {offsets = [0, 128], sizes = [8, 25], strides = [1, 1]} : vector<8x384xf32> to vector<8x25xf32>
    %92 = arith.addf %90, %91 : vector<8x25xf32>
    %93 = arith.negf %92 : vector<8x25xf32>
    %94 = math.exp %93 : vector<8x25xf32>
    %cst_33 = arith.constant 1.000000e+00 : f32
    %95 = vector.broadcast %cst_33 : f32 to vector<8x25xf32>
    %96 = arith.addf %95, %94 : vector<8x25xf32>
    %97 = arith.divf %95, %96 : vector<8x25xf32>
    %98 = vector.extract_strided_slice %79 {offsets = [0, 256], sizes = [8, 25], strides = [1, 1]} : vector<8x384xf32> to vector<8x25xf32>
    %99 = vector.extract_strided_slice %81 {offsets = [0, 256], sizes = [8, 25], strides = [1, 1]} : vector<8x384xf32> to vector<8x25xf32>
    %100 = vector.broadcast %3 : vector<1x25xf32> to vector<8x25xf32>
    %101 = arith.addf %99, %100 : vector<8x25xf32>
    %102 = arith.mulf %89, %101 : vector<8x25xf32>
    %103 = arith.addf %98, %102 : vector<8x25xf32>
    %104 = math.tanh %103 : vector<8x25xf32>
    %cst_34 = arith.constant 1.000000e+00 : f32
    %105 = vector.broadcast %cst_34 : f32 to vector<8x25xf32>
    %106 = arith.subf %105, %97 : vector<8x25xf32>
    %107 = arith.mulf %106, %104 : vector<8x25xf32>
    %108 = arith.mulf %97, %75 : vector<8x25xf32>
    %109 = arith.addf %107, %108 : vector<8x25xf32>
    %c0_35 = arith.constant 0 : index
    %c16_36 = arith.constant 16 : index
    %c0_37 = arith.constant 0 : index
    %110 = vector.load %arg10[%c0_35, %c16_36, %c0_37] : memref<1x64x25xf32, #tpu.memory_space<vmem>>, vector<1x8x25xf32>
    %111 = vector.shape_cast %110 : vector<1x8x25xf32> to vector<8x25xf32>
    %112 = vector.shape_cast %109 : vector<8x25xf32> to vector<1x8x25xf32>
    tpu.vector_store %arg10[%c0_35, %c16_36, %c0_37], %112 {strides = array<i32>} : memref<1x64x25xf32, #tpu.memory_space<vmem>>, vector<1x8x25xf32>,
    %c24 = arith.constant 24 : index
    %c0_38 = arith.constant 0 : index
    %113 = vector.load %arg14[%c24, %c0_38] : memref<64x384xf32, #tpu.memory_space<vmem>>, vector<8x384xf32>
    %114 = arith.truncf %109 : vector<8x25xf32> to vector<8x25xbf16>
    %cst_39 = arith.constant dense<0.000000e+00> : vector<8x384xf32>
    %115 = tpu.matmul %114, %1, %cst_39 {dimension_numbers = #tpu.dot_dimension_numbers<[1], [0], [0], [1], [0, 0, 1, 1], [], []>} : vector<8x25xbf16>, vector<25x384xbf16>, vector<8x384xf32> -> vector<8x384xf32>
    %116 = vector.extract_strided_slice %113 {offsets = [0, 0], sizes = [8, 25], strides = [1, 1]} : vector<8x384xf32> to vector<8x25xf32>
    %117 = vector.extract_strided_slice %115 {offsets = [0, 0], sizes = [8, 25], strides = [1, 1]} : vector<8x384xf32> to vector<8x25xf32>
    %118 = arith.addf %116, %117 : vector<8x25xf32>
    %119 = arith.negf %118 : vector<8x25xf32>
    %120 = math.exp %119 : vector<8x25xf32>
    %cst_40 = arith.constant 1.000000e+00 : f32
    %121 = vector.broadcast %cst_40 : f32 to vector<8x25xf32>
    %122 = arith.addf %121, %120 : vector<8x25xf32>
    %123 = arith.divf %121, %122 : vector<8x25xf32>
    %124 = vector.extract_strided_slice %113 {offsets = [0, 128], sizes = [8, 25], strides = [1, 1]} : vector<8x384xf32> to vector<8x25xf32>
    %125 = vector.extract_strided_slice %115 {offsets = [0, 128], sizes = [8, 25], strides = [1, 1]} : vector<8x384xf32> to vector<8x25xf32>
    %126 = arith.addf %124, %125 : vector<8x25xf32>
    %127 = arith.negf %126 : vector<8x25xf32>
    %128 = math.exp %127 : vector<8x25xf32>
    %cst_41 = arith.constant 1.000000e+00 : f32
    %129 = vector.broadcast %cst_41 : f32 to vector<8x25xf32>
    %130 = arith.addf %129, %128 : vector<8x25xf32>
    %131 = arith.divf %129, %130 : vector<8x25xf32>
    %132 = vector.extract_strided_slice %113 {offsets = [0, 256], sizes = [8, 25], strides = [1, 1]} : vector<8x384xf32> to vector<8x25xf32>
    %133 = vector.extract_strided_slice %115 {offsets = [0, 256], sizes = [8, 25], strides = [1, 1]} : vector<8x384xf32> to vector<8x25xf32>
    %134 = vector.broadcast %3 : vector<1x25xf32> to vector<8x25xf32>
    %135 = arith.addf %133, %134 : vector<8x25xf32>
    %136 = arith.mulf %123, %135 : vector<8x25xf32>
    %137 = arith.addf %132, %136 : vector<8x25xf32>
    %138 = math.tanh %137 : vector<8x25xf32>
    %cst_42 = arith.constant 1.000000e+00 : f32
    %139 = vector.broadcast %cst_42 : f32 to vector<8x25xf32>
    %140 = arith.subf %139, %131 : vector<8x25xf32>
    %141 = arith.mulf %140, %138 : vector<8x25xf32>
    %142 = arith.mulf %131, %109 : vector<8x25xf32>
    %143 = arith.addf %141, %142 : vector<8x25xf32>
    %c0_43 = arith.constant 0 : index
    %c24_44 = arith.constant 24 : index
    %c0_45 = arith.constant 0 : index
    %144 = vector.load %arg10[%c0_43, %c24_44, %c0_45] : memref<1x64x25xf32, #tpu.memory_space<vmem>>, vector<1x8x25xf32>
    %145 = vector.shape_cast %144 : vector<1x8x25xf32> to vector<8x25xf32>
    %146 = vector.shape_cast %143 : vector<8x25xf32> to vector<1x8x25xf32>
    tpu.vector_store %arg10[%c0_43, %c24_44, %c0_45], %146 {strides = array<i32>} : memref<1x64x25xf32, #tpu.memory_space<vmem>>, vector<1x8x25xf32>,
    %c32 = arith.constant 32 : index
    %c0_46 = arith.constant 0 : index
    %147 = vector.load %arg14[%c32, %c0_46] : memref<64x384xf32, #tpu.memory_space<vmem>>, vector<8x384xf32>
    %148 = arith.truncf %143 : vector<8x25xf32> to vector<8x25xbf16>
    %cst_47 = arith.constant dense<0.000000e+00> : vector<8x384xf32>
    %149 = tpu.matmul %148, %1, %cst_47 {dimension_numbers = #tpu.dot_dimension_numbers<[1], [0], [0], [1], [0, 0, 1, 1], [], []>} : vector<8x25xbf16>, vector<25x384xbf16>, vector<8x384xf32> -> vector<8x384xf32>
    %150 = vector.extract_strided_slice %147 {offsets = [0, 0], sizes = [8, 25], strides = [1, 1]} : vector<8x384xf32> to vector<8x25xf32>
    %151 = vector.extract_strided_slice %149 {offsets = [0, 0], sizes = [8, 25], strides = [1, 1]} : vector<8x384xf32> to vector<8x25xf32>
    %152 = arith.addf %150, %151 : vector<8x25xf32>
    %153 = arith.negf %152 : vector<8x25xf32>
    %154 = math.exp %153 : vector<8x25xf32>
    %cst_48 = arith.constant 1.000000e+00 : f32
    %155 = vector.broadcast %cst_48 : f32 to vector<8x25xf32>
    %156 = arith.addf %155, %154 : vector<8x25xf32>
    %157 = arith.divf %155, %156 : vector<8x25xf32>
    %158 = vector.extract_strided_slice %147 {offsets = [0, 128], sizes = [8, 25], strides = [1, 1]} : vector<8x384xf32> to vector<8x25xf32>
    %159 = vector.extract_strided_slice %149 {offsets = [0, 128], sizes = [8, 25], strides = [1, 1]} : vector<8x384xf32> to vector<8x25xf32>
    %160 = arith.addf %158, %159 : vector<8x25xf32>
    %161 = arith.negf %160 : vector<8x25xf32>
    %162 = math.exp %161 : vector<8x25xf32>
    %cst_49 = arith.constant 1.000000e+00 : f32
    %163 = vector.broadcast %cst_49 : f32 to vector<8x25xf32>
    %164 = arith.addf %163, %162 : vector<8x25xf32>
    %165 = arith.divf %163, %164 : vector<8x25xf32>
    %166 = vector.extract_strided_slice %147 {offsets = [0, 256], sizes = [8, 25], strides = [1, 1]} : vector<8x384xf32> to vector<8x25xf32>
    %167 = vector.extract_strided_slice %149 {offsets = [0, 256], sizes = [8, 25], strides = [1, 1]} : vector<8x384xf32> to vector<8x25xf32>
    %168 = vector.broadcast %3 : vector<1x25xf32> to vector<8x25xf32>
    %169 = arith.addf %167, %168 : vector<8x25xf32>
    %170 = arith.mulf %157, %169 : vector<8x25xf32>
    %171 = arith.addf %166, %170 : vector<8x25xf32>
    %172 = math.tanh %171 : vector<8x25xf32>
    %cst_50 = arith.constant 1.000000e+00 : f32
    %173 = vector.broadcast %cst_50 : f32 to vector<8x25xf32>
    %174 = arith.subf %173, %165 : vector<8x25xf32>
    %175 = arith.mulf %174, %172 : vector<8x25xf32>
    %176 = arith.mulf %165, %143 : vector<8x25xf32>
    %177 = arith.addf %175, %176 : vector<8x25xf32>
    %c0_51 = arith.constant 0 : index
    %c32_52 = arith.constant 32 : index
    %c0_53 = arith.constant 0 : index
    %178 = vector.load %arg10[%c0_51, %c32_52, %c0_53] : memref<1x64x25xf32, #tpu.memory_space<vmem>>, vector<1x8x25xf32>
    %179 = vector.shape_cast %178 : vector<1x8x25xf32> to vector<8x25xf32>
    %180 = vector.shape_cast %177 : vector<8x25xf32> to vector<1x8x25xf32>
    tpu.vector_store %arg10[%c0_51, %c32_52, %c0_53], %180 {strides = array<i32>} : memref<1x64x25xf32, #tpu.memory_space<vmem>>, vector<1x8x25xf32>,
    %c40 = arith.constant 40 : index
    %c0_54 = arith.constant 0 : index
    %181 = vector.load %arg14[%c40, %c0_54] : memref<64x384xf32, #tpu.memory_space<vmem>>, vector<8x384xf32>
    %182 = arith.truncf %177 : vector<8x25xf32> to vector<8x25xbf16>
    %cst_55 = arith.constant dense<0.000000e+00> : vector<8x384xf32>
    %183 = tpu.matmul %182, %1, %cst_55 {dimension_numbers = #tpu.dot_dimension_numbers<[1], [0], [0], [1], [0, 0, 1, 1], [], []>} : vector<8x25xbf16>, vector<25x384xbf16>, vector<8x384xf32> -> vector<8x384xf32>
    %184 = vector.extract_strided_slice %181 {offsets = [0, 0], sizes = [8, 25], strides = [1, 1]} : vector<8x384xf32> to vector<8x25xf32>
    %185 = vector.extract_strided_slice %183 {offsets = [0, 0], sizes = [8, 25], strides = [1, 1]} : vector<8x384xf32> to vector<8x25xf32>
    %186 = arith.addf %184, %185 : vector<8x25xf32>
    %187 = arith.negf %186 : vector<8x25xf32>
    %188 = math.exp %187 : vector<8x25xf32>
    %cst_56 = arith.constant 1.000000e+00 : f32
    %189 = vector.broadcast %cst_56 : f32 to vector<8x25xf32>
    %190 = arith.addf %189, %188 : vector<8x25xf32>
    %191 = arith.divf %189, %190 : vector<8x25xf32>
    %192 = vector.extract_strided_slice %181 {offsets = [0, 128], sizes = [8, 25], strides = [1, 1]} : vector<8x384xf32> to vector<8x25xf32>
    %193 = vector.extract_strided_slice %183 {offsets = [0, 128], sizes = [8, 25], strides = [1, 1]} : vector<8x384xf32> to vector<8x25xf32>
    %194 = arith.addf %192, %193 : vector<8x25xf32>
    %195 = arith.negf %194 : vector<8x25xf32>
    %196 = math.exp %195 : vector<8x25xf32>
    %cst_57 = arith.constant 1.000000e+00 : f32
    %197 = vector.broadcast %cst_57 : f32 to vector<8x25xf32>
    %198 = arith.addf %197, %196 : vector<8x25xf32>
    %199 = arith.divf %197, %198 : vector<8x25xf32>
    %200 = vector.extract_strided_slice %181 {offsets = [0, 256], sizes = [8, 25], strides = [1, 1]} : vector<8x384xf32> to vector<8x25xf32>
    %201 = vector.extract_strided_slice %183 {offsets = [0, 256], sizes = [8, 25], strides = [1, 1]} : vector<8x384xf32> to vector<8x25xf32>
    %202 = vector.broadcast %3 : vector<1x25xf32> to vector<8x25xf32>
    %203 = arith.addf %201, %202 : vector<8x25xf32>
    %204 = arith.mulf %191, %203 : vector<8x25xf32>
    %205 = arith.addf %200, %204 : vector<8x25xf32>
    %206 = math.tanh %205 : vector<8x25xf32>
    %cst_58 = arith.constant 1.000000e+00 : f32
    %207 = vector.broadcast %cst_58 : f32 to vector<8x25xf32>
    %208 = arith.subf %207, %199 : vector<8x25xf32>
    %209 = arith.mulf %208, %206 : vector<8x25xf32>
    %210 = arith.mulf %199, %177 : vector<8x25xf32>
    %211 = arith.addf %209, %210 : vector<8x25xf32>
    %c0_59 = arith.constant 0 : index
    %c40_60 = arith.constant 40 : index
    %c0_61 = arith.constant 0 : index
    %212 = vector.load %arg10[%c0_59, %c40_60, %c0_61] : memref<1x64x25xf32, #tpu.memory_space<vmem>>, vector<1x8x25xf32>
    %213 = vector.shape_cast %212 : vector<1x8x25xf32> to vector<8x25xf32>
    %214 = vector.shape_cast %211 : vector<8x25xf32> to vector<1x8x25xf32>
    tpu.vector_store %arg10[%c0_59, %c40_60, %c0_61], %214 {strides = array<i32>} : memref<1x64x25xf32, #tpu.memory_space<vmem>>, vector<1x8x25xf32>,
    %c48 = arith.constant 48 : index
    %c0_62 = arith.constant 0 : index
    %215 = vector.load %arg14[%c48, %c0_62] : memref<64x384xf32, #tpu.memory_space<vmem>>, vector<8x384xf32>
    %216 = arith.truncf %211 : vector<8x25xf32> to vector<8x25xbf16>
    %cst_63 = arith.constant dense<0.000000e+00> : vector<8x384xf32>
    %217 = tpu.matmul %216, %1, %cst_63 {dimension_numbers = #tpu.dot_dimension_numbers<[1], [0], [0], [1], [0, 0, 1, 1], [], []>} : vector<8x25xbf16>, vector<25x384xbf16>, vector<8x384xf32> -> vector<8x384xf32>
    %218 = vector.extract_strided_slice %215 {offsets = [0, 0], sizes = [8, 25], strides = [1, 1]} : vector<8x384xf32> to vector<8x25xf32>
    %219 = vector.extract_strided_slice %217 {offsets = [0, 0], sizes = [8, 25], strides = [1, 1]} : vector<8x384xf32> to vector<8x25xf32>
    %220 = arith.addf %218, %219 : vector<8x25xf32>
    %221 = arith.negf %220 : vector<8x25xf32>
    %222 = math.exp %221 : vector<8x25xf32>
    %cst_64 = arith.constant 1.000000e+00 : f32
    %223 = vector.broadcast %cst_64 : f32 to vector<8x25xf32>
    %224 = arith.addf %223, %222 : vector<8x25xf32>
    %225 = arith.divf %223, %224 : vector<8x25xf32>
    %226 = vector.extract_strided_slice %215 {offsets = [0, 128], sizes = [8, 25], strides = [1, 1]} : vector<8x384xf32> to vector<8x25xf32>
    %227 = vector.extract_strided_slice %217 {offsets = [0, 128], sizes = [8, 25], strides = [1, 1]} : vector<8x384xf32> to vector<8x25xf32>
    %228 = arith.addf %226, %227 : vector<8x25xf32>
    %229 = arith.negf %228 : vector<8x25xf32>
    %230 = math.exp %229 : vector<8x25xf32>
    %cst_65 = arith.constant 1.000000e+00 : f32
    %231 = vector.broadcast %cst_65 : f32 to vector<8x25xf32>
    %232 = arith.addf %231, %230 : vector<8x25xf32>
    %233 = arith.divf %231, %232 : vector<8x25xf32>
    %234 = vector.extract_strided_slice %215 {offsets = [0, 256], sizes = [8, 25], strides = [1, 1]} : vector<8x384xf32> to vector<8x25xf32>
    %235 = vector.extract_strided_slice %217 {offsets = [0, 256], sizes = [8, 25], strides = [1, 1]} : vector<8x384xf32> to vector<8x25xf32>
    %236 = vector.broadcast %3 : vector<1x25xf32> to vector<8x25xf32>
    %237 = arith.addf %235, %236 : vector<8x25xf32>
    %238 = arith.mulf %225, %237 : vector<8x25xf32>
    %239 = arith.addf %234, %238 : vector<8x25xf32>
    %240 = math.tanh %239 : vector<8x25xf32>
    %cst_66 = arith.constant 1.000000e+00 : f32
    %241 = vector.broadcast %cst_66 : f32 to vector<8x25xf32>
    %242 = arith.subf %241, %233 : vector<8x25xf32>
    %243 = arith.mulf %242, %240 : vector<8x25xf32>
    %244 = arith.mulf %233, %211 : vector<8x25xf32>
    %245 = arith.addf %243, %244 : vector<8x25xf32>
    %c0_67 = arith.constant 0 : index
    %c48_68 = arith.constant 48 : index
    %c0_69 = arith.constant 0 : index
    %246 = vector.load %arg10[%c0_67, %c48_68, %c0_69] : memref<1x64x25xf32, #tpu.memory_space<vmem>>, vector<1x8x25xf32>
    %247 = vector.shape_cast %246 : vector<1x8x25xf32> to vector<8x25xf32>
    %248 = vector.shape_cast %245 : vector<8x25xf32> to vector<1x8x25xf32>
    tpu.vector_store %arg10[%c0_67, %c48_68, %c0_69], %248 {strides = array<i32>} : memref<1x64x25xf32, #tpu.memory_space<vmem>>, vector<1x8x25xf32>,
    %c56 = arith.constant 56 : index
    %c0_70 = arith.constant 0 : index
    %249 = vector.load %arg14[%c56, %c0_70] : memref<64x384xf32, #tpu.memory_space<vmem>>, vector<8x384xf32>
    %250 = arith.truncf %245 : vector<8x25xf32> to vector<8x25xbf16>
    %cst_71 = arith.constant dense<0.000000e+00> : vector<8x384xf32>
    %251 = tpu.matmul %250, %1, %cst_71 {dimension_numbers = #tpu.dot_dimension_numbers<[1], [0], [0], [1], [0, 0, 1, 1], [], []>} : vector<8x25xbf16>, vector<25x384xbf16>, vector<8x384xf32> -> vector<8x384xf32>
    %252 = vector.extract_strided_slice %249 {offsets = [0, 0], sizes = [8, 25], strides = [1, 1]} : vector<8x384xf32> to vector<8x25xf32>
    %253 = vector.extract_strided_slice %251 {offsets = [0, 0], sizes = [8, 25], strides = [1, 1]} : vector<8x384xf32> to vector<8x25xf32>
    %254 = arith.addf %252, %253 : vector<8x25xf32>
    %255 = arith.negf %254 : vector<8x25xf32>
    %256 = math.exp %255 : vector<8x25xf32>
    %cst_72 = arith.constant 1.000000e+00 : f32
    %257 = vector.broadcast %cst_72 : f32 to vector<8x25xf32>
    %258 = arith.addf %257, %256 : vector<8x25xf32>
    %259 = arith.divf %257, %258 : vector<8x25xf32>
    %260 = vector.extract_strided_slice %249 {offsets = [0, 128], sizes = [8, 25], strides = [1, 1]} : vector<8x384xf32> to vector<8x25xf32>
    %261 = vector.extract_strided_slice %251 {offsets = [0, 128], sizes = [8, 25], strides = [1, 1]} : vector<8x384xf32> to vector<8x25xf32>
    %262 = arith.addf %260, %261 : vector<8x25xf32>
    %263 = arith.negf %262 : vector<8x25xf32>
    %264 = math.exp %263 : vector<8x25xf32>
    %cst_73 = arith.constant 1.000000e+00 : f32
    %265 = vector.broadcast %cst_73 : f32 to vector<8x25xf32>
    %266 = arith.addf %265, %264 : vector<8x25xf32>
    %267 = arith.divf %265, %266 : vector<8x25xf32>
    %268 = vector.extract_strided_slice %249 {offsets = [0, 256], sizes = [8, 25], strides = [1, 1]} : vector<8x384xf32> to vector<8x25xf32>
    %269 = vector.extract_strided_slice %251 {offsets = [0, 256], sizes = [8, 25], strides = [1, 1]} : vector<8x384xf32> to vector<8x25xf32>
    %270 = vector.broadcast %3 : vector<1x25xf32> to vector<8x25xf32>
    %271 = arith.addf %269, %270 : vector<8x25xf32>
    %272 = arith.mulf %259, %271 : vector<8x25xf32>
    %273 = arith.addf %268, %272 : vector<8x25xf32>
    %274 = math.tanh %273 : vector<8x25xf32>
    %cst_74 = arith.constant 1.000000e+00 : f32
    %275 = vector.broadcast %cst_74 : f32 to vector<8x25xf32>
    %276 = arith.subf %275, %267 : vector<8x25xf32>
    %277 = arith.mulf %276, %274 : vector<8x25xf32>
    %278 = arith.mulf %267, %245 : vector<8x25xf32>
    %279 = arith.addf %277, %278 : vector<8x25xf32>
    %c0_75 = arith.constant 0 : index
    %c56_76 = arith.constant 56 : index
    %c0_77 = arith.constant 0 : index
    %280 = vector.load %arg10[%c0_75, %c56_76, %c0_77] : memref<1x64x25xf32, #tpu.memory_space<vmem>>, vector<1x8x25xf32>
    %281 = vector.shape_cast %280 : vector<1x8x25xf32> to vector<8x25xf32>
    %282 = vector.shape_cast %279 : vector<8x25xf32> to vector<1x8x25xf32>
    tpu.vector_store %arg10[%c0_75, %c56_76, %c0_77], %282 {strides = array<i32>} : memref<1x64x25xf32, #tpu.memory_space<vmem>>, vector<1x8x25xf32>,
    %c0_78 = arith.constant 0 : index
    %c0_79 = arith.constant 0 : index
    %283 = vector.load %arg6[%c0_78, %c0_79] : memref<25x1xf32, #tpu.memory_space<vmem>>, vector<25x1xf32>
    %cst_80 = arith.constant dense<0.000000e+00> : vector<8x1xf32>
    %284 = tpu.matmul %279, %283, %cst_80 {dimension_numbers = #tpu.dot_dimension_numbers<[1], [0], [0], [1], [0, 0, 1, 1], [], []>} : vector<8x25xf32>, vector<25x1xf32>, vector<8x1xf32> -> vector<8x1xf32>
    %c0_81 = arith.constant 0 : index
    %c0_82 = arith.constant 0 : index
    %285 = vector.load %arg7[%c0_81, %c0_82] : memref<1x1xf32, #tpu.memory_space<vmem>>, vector<1x1xf32>
    %286 = vector.broadcast %285 : vector<1x1xf32> to vector<8x1xf32>
    %287 = arith.addf %284, %286 : vector<8x1xf32>
    %c0_83 = arith.constant 0 : index
    %c0_84 = arith.constant 0 : index
    %288 = vector.load %arg8[%c0_83, %c0_84] : memref<8x1xf32, #tpu.memory_space<vmem>>, vector<8x1xf32>
    %c0_85 = arith.constant 0 : index
    %c0_86 = arith.constant 0 : index
    %289 = vector.load %arg9[%c0_85, %c0_86] : memref<8x1xf32, #tpu.memory_space<vmem>>, vector<8x1xf32>
    %cst_87 = arith.constant 0.000000e+00 : f32
    %290 = vector.broadcast %cst_87 : f32 to vector<8x1xf32>
    %291 = arith.maximumf %287, %290 : vector<8x1xf32>
    %292 = arith.mulf %287, %288 : vector<8x1xf32>
    %293 = arith.subf %291, %292 : vector<8x1xf32>
    %294 = math.absf %287 : vector<8x1xf32>
    %cst_88 = arith.constant 0.000000e+00 : f32
    %295 = vector.broadcast %cst_88 : f32 to vector<8x1xf32>
    %296 = arith.subf %295, %294 : vector<8x1xf32>
    %297 = math.exp %296 : vector<8x1xf32>
    %298 = math.log1p %297 : vector<8x1xf32>
    %299 = arith.addf %293, %298 : vector<8x1xf32>
    %cst_89 = arith.constant 0.000000e+00 : f32
    %300 = vector.broadcast %cst_89 : f32 to vector<8x1xf32>
    %301 = arith.cmpf ogt, %287, %300 : vector<8x1xf32>
    %302 = arith.extui %301 : vector<8x1xi1> to vector<8x1xi32>
    %303 = arith.sitofp %302 : vector<8x1xi32> to vector<8x1xf32>
    %304 = arith.cmpf oeq, %303, %288 : vector<8x1xf32>
    %305 = arith.extui %304 : vector<8x1xi1> to vector<8x1xi32>
    %306 = arith.sitofp %305 : vector<8x1xi32> to vector<8x1xf32>
    %cst_90 = arith.constant 0.000000e+00 : f32
    %307 = vector.broadcast %cst_90 : f32 to vector<8x1xf32>
    %308 = arith.cmpf ogt, %289, %307 : vector<8x1xf32>
    %cst_91 = arith.constant 0.000000e+00 : f32
    %309 = vector.broadcast %cst_91 : f32 to vector<8x1xf32>
    %310 = arith.select %308, %299, %309 : vector<8x1xi1>, vector<8x1xf32>
    %311 = vector.shape_cast %310 : vector<8x1xf32> to vector<1x8x1xf32>
    %cst_92 = arith.constant dense<0.000000e+00> : vector<1xf32>
    %312 = vector.multi_reduction <add>, %311, %cst_92 [1, 2] : vector<1x8x1xf32> to vector<1xf32>
    %313 = vector.shape_cast %312 : vector<1xf32> to vector<1x1x1xf32>
    %314 = vector.extract %313[0, 0, 0] : f32 from vector<1x1x1xf32>
    %315 = vector.broadcast %314 : f32 to vector<1x1xf32>
    %c0_93 = arith.constant 0 : index
    %c0_94 = arith.constant 0 : index
    %c0_95 = arith.constant 0 : index
    %316 = vector.load %arg11[%c0_93, %c0_94, %c0_95] : memref<1x1x1xf32, #tpu.memory_space<vmem>>, vector<1x1x1xf32>
    %317 = vector.shape_cast %316 : vector<1x1x1xf32> to vector<1x1xf32>
    %318 = vector.shape_cast %315 : vector<1x1xf32> to vector<1x1x1xf32>
    tpu.vector_store %arg11[%c0_93, %c0_94, %c0_95], %318 {strides = array<i32>} : memref<1x1x1xf32, #tpu.memory_space<vmem>>, vector<1x1x1xf32>,
    %cst_96 = arith.constant 0.000000e+00 : f32
    %319 = vector.broadcast %cst_96 : f32 to vector<8x1xf32>
    %320 = arith.cmpf ogt, %289, %319 : vector<8x1xf32>
    %cst_97 = arith.constant 0.000000e+00 : f32
    %321 = vector.broadcast %cst_97 : f32 to vector<8x1xf32>
    %322 = arith.select %320, %306, %321 : vector<8x1xi1>, vector<8x1xf32>
    %323 = vector.shape_cast %322 : vector<8x1xf32> to vector<1x8x1xf32>
    %cst_98 = arith.constant dense<0.000000e+00> : vector<1xf32>
    %324 = vector.multi_reduction <add>, %323, %cst_98 [1, 2] : vector<1x8x1xf32> to vector<1xf32>
    %325 = vector.shape_cast %324 : vector<1xf32> to vector<1x1x1xf32>
    %326 = vector.extract %325[0, 0, 0] : f32 from vector<1x1x1xf32>
    %327 = vector.broadcast %326 : f32 to vector<1x1xf32>
    %c0_99 = arith.constant 0 : index
    %c0_100 = arith.constant 0 : index
    %c0_101 = arith.constant 0 : index
    %328 = vector.load %arg12[%c0_99, %c0_100, %c0_101] : memref<1x1x1xf32, #tpu.memory_space<vmem>>, vector<1x1x1xf32>
    %329 = vector.shape_cast %328 : vector<1x1x1xf32> to vector<1x1xf32>
    %330 = vector.shape_cast %327 : vector<1x1xf32> to vector<1x1x1xf32>
    tpu.vector_store %arg12[%c0_99, %c0_100, %c0_101], %330 {strides = array<i32>} : memref<1x1x1xf32, #tpu.memory_space<vmem>>, vector<1x1x1xf32>,
    %331 = vector.shape_cast %289 : vector<8x1xf32> to vector<1x8x1xf32>
    %cst_102 = arith.constant dense<0.000000e+00> : vector<1xf32>
    %332 = vector.multi_reduction <add>, %331, %cst_102 [1, 2] : vector<1x8x1xf32> to vector<1xf32>
    %333 = vector.shape_cast %332 : vector<1xf32> to vector<1x1x1xf32>
    %334 = vector.extract %333[0, 0, 0] : f32 from vector<1x1x1xf32>
    %335 = vector.broadcast %334 : f32 to vector<1x1xf32>
    %c0_103 = arith.constant 0 : index
    %c0_104 = arith.constant 0 : index
    %c0_105 = arith.constant 0 : index
    %336 = vector.load %arg13[%c0_103, %c0_104, %c0_105] : memref<1x1x1xf32, #tpu.memory_space<vmem>>, vector<1x1x1xf32>
    %337 = vector.shape_cast %336 : vector<1x1x1xf32> to vector<1x1xf32>
    %338 = vector.shape_cast %335 : vector<1x1xf32> to vector<1x1x1xf32>
    tpu.vector_store %arg13[%c0_103, %c0_104, %c0_105], %338 {strides = array<i32>} : memref<1x1x1xf32, #tpu.memory_space<vmem>>, vector<1x1x1xf32>,
    return
  }
  func.func @transform_0(%arg0: i32) -> (i32, i32, i32) {
    %c0_i32 = arith.constant 0 : i32
    %c0_i32_0 = arith.constant 0 : i32
    %c0_i32_1 = arith.constant 0 : i32
    return %arg0, %c0_i32, %c0_i32_0 : i32, i32, i32
  }
  func.func @transform_1(%arg0: i32) -> (i32, i32) {
    %c0_i32 = arith.constant 0 : i32
    %c0_i32_0 = arith.constant 0 : i32
    %c0_i32_1 = arith.constant 0 : i32
    return %c0_i32, %c0_i32_0 : i32, i32
  }
  func.func @transform_2(%arg0: i32) -> (i32, i32) {
    %c0_i32 = arith.constant 0 : i32
    %c0_i32_0 = arith.constant 0 : i32
    %c0_i32_1 = arith.constant 0 : i32
    return %c0_i32, %c0_i32_0 : i32, i32
  }
  func.func @transform_3(%arg0: i32) -> (i32, i32) {
    %c0_i32 = arith.constant 0 : i32
    %c0_i32_0 = arith.constant 0 : i32
    %c0_i32_1 = arith.constant 0 : i32
    return %c0_i32, %c0_i32_0 : i32, i32
  }
  func.func @transform_4(%arg0: i32) -> (i32, i32) {
    %c0_i32 = arith.constant 0 : i32
    %c0_i32_0 = arith.constant 0 : i32
    %c0_i32_1 = arith.constant 0 : i32
    return %c0_i32, %c0_i32_0 : i32, i32
  }
  func.func @transform_5(%arg0: i32) -> (i32, i32) {
    %c0_i32 = arith.constant 0 : i32
    %c0_i32_0 = arith.constant 0 : i32
    %c0_i32_1 = arith.constant 0 : i32
    return %c0_i32, %c0_i32_0 : i32, i32
  }
  func.func @transform_6(%arg0: i32) -> (i32, i32) {
    %c0_i32 = arith.constant 0 : i32
    %c0_i32_0 = arith.constant 0 : i32
    %c0_i32_1 = arith.constant 0 : i32
    return %c0_i32, %c0_i32_0 : i32, i32
  }
  func.func @transform_7(%arg0: i32) -> (i32, i32) {
    %c0_i32 = arith.constant 0 : i32
    %c0_i32_0 = arith.constant 0 : i32
    return %arg0, %c0_i32 : i32, i32
  }
  func.func @transform_8(%arg0: i32) -> (i32, i32) {
    %c0_i32 = arith.constant 0 : i32
    %c0_i32_0 = arith.constant 0 : i32
    return %arg0, %c0_i32 : i32, i32
  }
  func.func @transform_9(%arg0: i32) -> (i32, i32, i32) {
    %c0_i32 = arith.constant 0 : i32
    %c0_i32_0 = arith.constant 0 : i32
    %c0_i32_1 = arith.constant 0 : i32
    return %arg0, %c0_i32, %c0_i32_0 : i32, i32, i32
  }
  func.func @transform_10(%arg0: i32) -> (i32, i32, i32) {
    %c0_i32 = arith.constant 0 : i32
    %c0_i32_0 = arith.constant 0 : i32
    %c0_i32_1 = arith.constant 0 : i32
    return %arg0, %c0_i32, %c0_i32_0 : i32, i32, i32
  }
  func.func @transform_11(%arg0: i32) -> (i32, i32, i32) {
    %c0_i32 = arith.constant 0 : i32
    %c0_i32_0 = arith.constant 0 : i32
    %c0_i32_1 = arith.constant 0 : i32
    return %arg0, %c0_i32, %c0_i32_0 : i32, i32, i32
  }
  func.func @transform_12(%arg0: i32) -> (i32, i32, i32) {
    %c0_i32 = arith.constant 0 : i32
    %c0_i32_0 = arith.constant 0 : i32
    %c0_i32_1 = arith.constant 0 : i32
    return %arg0, %c0_i32, %c0_i32_0 : i32, i32, i32
  }
}

</mosaic_0001>

<llo_original>
// kernel: tpu_custom_call.1
$region0: #{tpu_custom_call.1}
  #allocation0 [shape = 'u32[]', space=smem, size = 0x4, offset = 0x4, fixed_abs, tag = 'smem constant byte address 0x4 - core index']
  #allocation1 [shape = 'u32[72,128]{1,0:T(1,128)}', space=vmem, size = 0x9000, scoped, tag = 'internal scratch']
  #allocation2 [shape = 'f32[64,384]{1,0:T(8,128)}', space=vmem, size = 0x18000, scoped, tag = 'scratch operand']
  #allocation3 [shape = 'f32[1,1]{1,0:T(1,128)S(1)}', space=vmem, size = 0x200, scoped, tag = 'scoped memory for tpu_custom_call.1']
  %s0 = inlined_call_operand.vmem [shape: bf16[1,64,25], index: 0, kind: input, shape index: {}]
  %s1 = inlined_call_operand.vmem [shape: bf16[25,384], index: 1, kind: input, shape index: {}]
  %s2 = inlined_call_operand.hbm [shape: bf16[25,384], index: 2, kind: input, shape index: {}]
  %s3 = inlined_call_operand.vmem [shape: f32[1,384], index: 3, kind: input, shape index: {}]
  %s4 = inlined_call_operand.vmem [shape: f32[1,25], index: 4, kind: input, shape index: {}]
  %s5 = inlined_call_operand.vmem [shape: f32[25,1], index: 5, kind: input, shape index: {}]
  %s6 = inlined_call_operand.<no memory space> [shape: f32[1,1], index: 6, kind: input, shape index: {}]
  %s7 = inlined_call_operand.vmem [shape: f32[8,1], index: 7, kind: input, shape index: {}]
  %s8 = inlined_call_operand.vmem [shape: f32[8,1], index: 8, kind: input, shape index: {}]
  %s9 = inlined_call_operand.vmem [shape: f32[1,64,25], index: 9, kind: output, shape index: {0}]
  %s10 = inlined_call_operand.hbm [shape: f32[1,1,1], index: 10, kind: output, shape index: {1}]
  %s11 = inlined_call_operand.hbm [shape: f32[1,1,1], index: 11, kind: output, shape index: {2}]
  %s12 = inlined_call_operand.hbm [shape: f32[1,1,1], index: 12, kind: output, shape index: {3}]
  %13 = xla_tuple %s9, %s10, %s11, %s12
  %s14 = sld [smem:[#allocation0]]
  $region74: #{tpu_custom_call.1} parent=0
    _
  %s16 = ssub.s32 1, %s14
  %s17 = scalar_select 0, %s16, %s14
  %v18 = vstv %s6
  %19 = vst [vmem:[#allocation3] sm:$0x1] %v18
  $region1: #{tpu_custom_call.1} parent=0
    #allocation4 [shape = 'u8[24576]{0}', space=vmem, size = 0x6000, scoped, tag = 'input window, operand 2, single buffered']
    #allocation5 [shape = 's32[1]{0}', space=sflag, size = 0x4, scoped, tag = 'scoped memory for tpu_custom_call.1']
    #allocation6 [shape = 's32[1]{0}', space=sflag, size = 0x4, scoped, tag = 'scoped memory for tpu_custom_call.1']
    #allocation7 [shape = 'u8[512]{0}', space=vmem, size = 0x400, scoped, tag = 'output window, operand 1, single buffered']
    #allocation8 [shape = 'u8[512]{0}', space=vmem, size = 0x400, scoped, tag = 'output window, operand 2, single buffered']
    #allocation9 [shape = 's32[1]{0}', space=sflag, size = 0x4, scoped, tag = 'scoped memory for tpu_custom_call.1']
    #allocation10 [shape = 'u8[512]{0}', space=vmem, size = 0x400, scoped, tag = 'output window, operand 3, single buffered']
    %20 = vsyncpa [#allocation5], 0
    %21 = vsyncpa [#allocation6], 0
    %22 = vsyncpa [#allocation9], 0
    // Predicated region
    $region2: #{tpu_custom_call.1} parent=1 // pred_check
      _
    $region3: #{tpu_custom_call.1} parent=1 // pred_check_branch
      %24 = sbr.rel (0) target = $region5
    $region4: #{tpu_custom_call.1} parent=1 // pred_region
      _
    $region5: #{tpu_custom_call.1} parent=1 // pred_fallthru
      _
    // Predicated region
    $region6: #{tpu_custom_call.1} parent=1 // pred_check
      _
    $region7: #{tpu_custom_call.1} parent=1 // pred_check_branch
      %26 = sbr.rel (0) target = $region9
    $region8: #{tpu_custom_call.1} parent=1 // pred_region
      _
    $region9: #{tpu_custom_call.1} parent=1 // pred_fallthru
      _
    // Predicated region
    $region10: #{tpu_custom_call.1} parent=1 // pred_check
      _
    $region11: #{tpu_custom_call.1} parent=1 // pred_check_branch
      %28 = sbr.rel (0) target = $region13
    $region12: #{tpu_custom_call.1} parent=1 // pred_region
      %30 = vsyncadd [#allocation5], 0
      %s31 = sshll.u32 %s2, 4
      %s32 = int_to_ptr.hbm [resolvable:$true] %s31
      %s33 = sshll.u32 [#allocation4], 4
      %s34 = int_to_ptr.vmem [resolvable:$true] %s33
      %39 = dma.hbm_to_vmem [thread:$0]  %s32, 768, %s34, [#allocation5], 192, 192, 12
    $region13: #{tpu_custom_call.1} parent=1 // pred_fallthru
      _
    // Predicated region
    $region14: #{tpu_custom_call.1} parent=1 // pred_check
      _
    $region15: #{tpu_custom_call.1} parent=1 // pred_check_branch
      %41 = sbr.rel (0) target = $region17
    $region16: #{tpu_custom_call.1} parent=1 // pred_region
      _
    $region17: #{tpu_custom_call.1} parent=1 // pred_fallthru
      _
    // Predicated region
    $region18: #{tpu_custom_call.1} parent=1 // pred_check
      _
    $region19: #{tpu_custom_call.1} parent=1 // pred_check_branch
      %43 = sbr.rel (0) target = $region21
    $region20: #{tpu_custom_call.1} parent=1 // pred_region
      _
    $region21: #{tpu_custom_call.1} parent=1 // pred_fallthru
      _
    // Predicated region
    $region22: #{tpu_custom_call.1} parent=1 // pred_check
      _
    $region23: #{tpu_custom_call.1} parent=1 // pred_check_branch
      %45 = sbr.rel (0) target = $region25
    $region24: #{tpu_custom_call.1} parent=1 // pred_region
      _
    $region25: #{tpu_custom_call.1} parent=1 // pred_fallthru
      _
    // Predicated region
    $region26: #{tpu_custom_call.1} parent=1 // pred_check
      _
    $region27: #{tpu_custom_call.1} parent=1 // pred_check_branch
      %47 = sbr.rel (0) target = $region29
    $region28: #{tpu_custom_call.1} parent=1 // pred_region
      _
    $region29: #{tpu_custom_call.1} parent=1 // pred_fallthru
      _
    // Predicated region
    $region30: #{tpu_custom_call.1} parent=1 // pred_check
      _
    $region31: #{tpu_custom_call.1} parent=1 // pred_check_branch
      %49 = sbr.rel (0) target = $region33
    $region32: #{tpu_custom_call.1} parent=1 // pred_region
      _
    $region33: #{tpu_custom_call.1} parent=1 // pred_fallthru
      _
    // Predicated region
    $region34: #{tpu_custom_call.1} parent=1 // pred_check
      _
    $region35: #{tpu_custom_call.1} parent=1 // pred_check_branch
      %51 = sbr.rel (0) target = $region37
    $region36: #{tpu_custom_call.1} parent=1 // pred_region
      _
    $region37: #{tpu_custom_call.1} parent=1 // pred_fallthru
      _
    // Predicated region
    $region38: #{tpu_custom_call.1} parent=1 // pred_check
      _
    $region39: #{tpu_custom_call.1} parent=1 // pred_check_branch
      %53 = sbr.rel (0) target = $region41
    $region40: #{tpu_custom_call.1} parent=1 // pred_region
      %55 = dma.done [#allocation5], 768
    $region41: #{tpu_custom_call.1} parent=1 // pred_fallthru
      _
    %v57 = vld [vmem:[%s1] sm:$0xff]
    %v58 = vld [vmem:[%s1 + $0x8] sm:$0xf]
    %v59 = vld [vmem:[%s1 + $0xc] sm:$0xff]
    %v60 = vld [vmem:[%s1 + $0x14] sm:$0xf]
    %v61 = vld [vmem:[%s1 + $0x18] sm:$0xff]
    %v62 = vld [vmem:[%s1 + $0x20] sm:$0xf]
    %v63 = vld [vmem:[%s1 + $0x24] sm:$0x11]
    %v64 = vld [vmem:[%s1 + $0x2c] sm:$0x1]
    %v65 = vld [vmem:[#allocation4] sm:$0xff]
    %v66 = vld [vmem:[#allocation4 + $0x8] sm:$0xf]
    %v67 = vld [vmem:[#allocation4 + $0xc] sm:$0xff]
    %v68 = vld [vmem:[#allocation4 + $0x14] sm:$0xf]
    %v69 = vld [vmem:[#allocation4 + $0x18] sm:$0xff]
    %v70 = vld [vmem:[#allocation4 + $0x20] sm:$0xf]
    %v71 = vld [vmem:[#allocation4 + $0x24] sm:$0x11]
    %v72 = vld [vmem:[#allocation4 + $0x2c] sm:$0x1]
    %v73 = vld [vmem:[%s3] sm:$0x7]
    %v74 = vld [vmem:[%s4] sm:$0x1]
    %v75 = vld [vmem:[%s0] sm:$0xf]
    %v76 = vld [vmem:[%s0 + $0x4] sm:$0xf]
    %v77 = vld [vmem:[%s0 + $0x8] sm:$0xf]
    %v78 = vld [vmem:[%s0 + $0xc] sm:$0xf]
    %v79 = vld [vmem:[%s0 + $0x10] sm:$0xf]
    %v80 = vld [vmem:[%s0 + $0x14] sm:$0xf]
    %v81 = vld [vmem:[%s0 + $0x18] sm:$0xf]
    %v82 = vld [vmem:[%s0 + $0x1c] sm:$0xf]
    %v84 = vperm.slane %v73, 0
    %v85 = vperm.slane %v73, 1
    %v86 = vperm.slane %v73, 2
    %v98 = vunpack.c.l.b16 %v75
    %v99 = vunpack.c.l.b16 %v76
    %v100 = vunpack.c.l.b16 %v77
    %v101 = vunpack.c.l.b16 %v78
    %v102 = vunpack.c.l.b16 %v79
    %v103 = vunpack.c.l.b16 %v80
    %v104 = vunpack.c.l.b16 %v81
    %v105 = vunpack.c.l.b16 %v82
    %v106 = vpack.c.b16 %v99, %v98
    %v107 = vpack.c.b16 %v101, %v100
    %v108 = vpack.c.b16 %v103, %v102
    %v109 = vpack.c.b16 %v105, %v104
    %v118 = vunpack.c.l.b16 %v57
    %v119 = vunpack.c.h.b16 %v57
    %v120 = vunpack.c.l.b16 %v58
    %v121 = vunpack.c.l.b16 %v59
    %v122 = vunpack.c.h.b16 %v59
    %v123 = vunpack.c.l.b16 %v60
    %v124 = vunpack.c.l.b16 %v61
    %v125 = vunpack.c.h.b16 %v61
    %v126 = vunpack.c.l.b16 %v62
    %v127 = vunpack.c.l.b16 %v63
    %v128 = vunpack.c.h.b16 %v63
    %v129 = vunpack.c.l.b16 %v64
    %v130 = vpack.c.b16 %v121, %v118
    %v131 = vpack.c.b16 %v122, %v119
    %v132 = vpack.c.b16 %v123, %v120
    %v133 = vpack.c.b16 %v127, %v124
    %v134 = vpack.c.b16 %v128, %v125
    %v135 = vpack.c.b16 %v129, %v126
    %vm139 = vcmask 203776
    %v141 = vsel %vm139, %v106, 0
    %v144 = vsel %vm139, %v107, 0
    %v147 = vsel %vm139, %v108, 0
    %v150 = vsel %vm139, %v109, 0
    %vm152 = vcmask 1043456
    %vm153 = vcmask 1044480
    %v154 = vsel %vm152, 4294967295, 65535
    %v155 = vsel %vm153, %v154, 0
    %v157 = vand.u32 %v133, %v155
    %v160 = vand.u32 %v134, %v155
    %v163 = vand.u32 %v135, %v155
    %165 = vmatpush.bf16.msra.mxu0 0
    %166 = vmatpush.bf16.msra.mxu0 0
    %167 = vmatpush.bf16.msra.mxu0 0
    %168 = vmatpush.bf16.msra.mxu0 0
    %169 = vmatpush.bf16.msra.mxu0 0
    %170 = vmatpush.bf16.msra.mxu0 0
    %171 = vmatpush.bf16.msra.mxu0 %v157
    %172 = vmatpush.bf16.msra.mxu0 %v130
    %173 = vmatmul.bf16.gmra.mxu0 %v141
    %v174 = vpop.f32.mrf.mxu0
    %v175 = vadd.f32 %v84, %v174
    %v176 = vpop.f32.mrf.mxu0
    %v177 = vadd.f32 %v84, %v176
    %178 = vmatmul.bf16.gmra.mxu0 %v144
    %v179 = vpop.f32.mrf.mxu0
    %v180 = vadd.f32 %v84, %v179
    %v181 = vpop.f32.mrf.mxu0
    %v182 = vadd.f32 %v84, %v181
    %183 = vmatmul.bf16.gmra.mxu0 %v147
    %v184 = vpop.f32.mrf.mxu0
    %v185 = vadd.f32 %v84, %v184
    %v186 = vpop.f32.mrf.mxu0
    %v187 = vadd.f32 %v84, %v186
    %188 = vmatmul.bf16.gmra.mxu0 %v150
    %v189 = vpop.f32.mrf.mxu0
    %v190 = vadd.f32 %v84, %v189
    %v191 = vpop.f32.mrf.mxu0
    %v192 = vadd.f32 %v84, %v191
    %193 = vdwg.mxu0
    %194 = vmatpush.bf16.msra.mxu0 0
    %195 = vmatpush.bf16.msra.mxu0 0
    %196 = vmatpush.bf16.msra.mxu0 0
    %197 = vmatpush.bf16.msra.mxu0 0
    %198 = vmatpush.bf16.msra.mxu0 0
    %199 = vmatpush.bf16.msra.mxu0 0
    %200 = vmatpush.bf16.msra.mxu0 %v160
    %201 = vmatpush.bf16.msra.mxu0 %v131
    %202 = vmatmul.bf16.gmra.mxu0 %v141
    %v203 = vpop.f32.mrf.mxu0
    %v204 = vadd.f32 %v85, %v203
    %v205 = vpop.f32.mrf.mxu0
    %v206 = vadd.f32 %v85, %v205
    %207 = vmatmul.bf16.gmra.mxu0 %v144
    %v208 = vpop.f32.mrf.mxu0
    %v209 = vadd.f32 %v85, %v208
    %v210 = vpop.f32.mrf.mxu0
    %v211 = vadd.f32 %v85, %v210
    %212 = vmatmul.bf16.gmra.mxu0 %v147
    %v213 = vpop.f32.mrf.mxu0
    %v214 = vadd.f32 %v85, %v213
    %v215 = vpop.f32.mrf.mxu0
    %v216 = vadd.f32 %v85, %v215
    %217 = vmatmul.bf16.gmra.mxu0 %v150
    %v218 = vpop.f32.mrf.mxu0
    %v219 = vadd.f32 %v85, %v218
    %v220 = vpop.f32.mrf.mxu0
    %v221 = vadd.f32 %v85, %v220
    %222 = vdwg.mxu0
    %223 = vmatpush.bf16.msra.mxu0 0
    %224 = vmatpush.bf16.msra.mxu0 0
    %225 = vmatpush.bf16.msra.mxu0 0
    %226 = vmatpush.bf16.msra.mxu0 0
    %227 = vmatpush.bf16.msra.mxu0 0
    %228 = vmatpush.bf16.msra.mxu0 0
    %229 = vmatpush.bf16.msra.mxu0 %v163
    %230 = vmatpush.bf16.msra.mxu0 %v132
    %231 = vmatmul.bf16.gmra.mxu0 %v141
    %v232 = vpop.f32.mrf.mxu0
    %v233 = vadd.f32 %v86, %v232
    %v234 = vpop.f32.mrf.mxu0
    %v235 = vadd.f32 %v86, %v234
    %236 = vmatmul.bf16.gmra.mxu0 %v144
    %v237 = vpop.f32.mrf.mxu0
    %v238 = vadd.f32 %v86, %v237
    %v239 = vpop.f32.mrf.mxu0
    %v240 = vadd.f32 %v86, %v239
    %241 = vmatmul.bf16.gmra.mxu0 %v147
    %v242 = vpop.f32.mrf.mxu0
    %v243 = vadd.f32 %v86, %v242
    %v244 = vpop.f32.mrf.mxu0
    %v245 = vadd.f32 %v86, %v244
    %246 = vmatmul.bf16.gmra.mxu0 %v150
    %v247 = vpop.f32.mrf.mxu0
    %v248 = vadd.f32 %v86, %v247
    %v249 = vpop.f32.mrf.mxu0
    %v250 = vadd.f32 %v86, %v249
    %251 = vdwg.mxu0
    %252 = vst [vmem:[#allocation2] sm:$0xff] %v175
    %253 = vst [vmem:[#allocation2 + $0x8] sm:$0xff] %v204
    %254 = vst [vmem:[#allocation2 + $0x10] sm:$0xff] %v233
    %255 = vst [vmem:[#allocation2 + $0x18] sm:$0xff] %v177
    %256 = vst [vmem:[#allocation2 + $0x20] sm:$0xff] %v206
    %257 = vst [vmem:[#allocation2 + $0x28] sm:$0xff] %v235
    %258 = vst [vmem:[#allocation2 + $0x30] sm:$0xff] %v180
    %259 = vst [vmem:[#allocation2 + $0x38] sm:$0xff] %v209
    %260 = vst [vmem:[#allocation2 + $0x40] sm:$0xff] %v238
    %261 = vst [vmem:[#allocation2 + $0x48] sm:$0xff] %v182
    %262 = vst [vmem:[#allocation2 + $0x50] sm:$0xff] %v211
    %263 = vst [vmem:[#allocation2 + $0x58] sm:$0xff] %v240
    %264 = vst [vmem:[#allocation2 + $0x60] sm:$0xff] %v185
    %265 = vst [vmem:[#allocation2 + $0x68] sm:$0xff] %v214
    %266 = vst [vmem:[#allocation2 + $0x70] sm:$0xff] %v243
    %267 = vst [vmem:[#allocation2 + $0x78] sm:$0xff] %v187
    %268 = vst [vmem:[#allocation2 + $0x80] sm:$0xff] %v216
    %269 = vst [vmem:[#allocation2 + $0x88] sm:$0xff] %v245
    %270 = vst [vmem:[#allocation2 + $0x90] sm:$0xff] %v190
    %271 = vst [vmem:[#allocation2 + $0x98] sm:$0xff] %v219
    %272 = vst [vmem:[#allocation2 + $0xa0] sm:$0xff] %v248
    %273 = vst [vmem:[#allocation2 + $0xa8] sm:$0xff] %v192
    %274 = vst [vmem:[#allocation2 + $0xb0] sm:$0xff] %v221
    %275 = vst [vmem:[#allocation2 + $0xb8] sm:$0xff] %v250
    %v276 = vld [vmem:[#allocation2] sm:$0xff]
    %v277 = vld [vmem:[#allocation2 + $0x8] sm:$0xff]
    %v278 = vld [vmem:[#allocation2 + $0x10] sm:$0xff]
    %v287 = vunpack.c.l.b16 %v65
    %v288 = vunpack.c.h.b16 %v65
    %v289 = vunpack.c.l.b16 %v66
    %v290 = vunpack.c.l.b16 %v67
    %v291 = vunpack.c.h.b16 %v67
    %v292 = vunpack.c.l.b16 %v68
    %v293 = vunpack.c.l.b16 %v69
    %v294 = vunpack.c.h.b16 %v69
    %v295 = vunpack.c.l.b16 %v70
    %v296 = vunpack.c.l.b16 %v71
    %v297 = vunpack.c.h.b16 %v71
    %v298 = vunpack.c.l.b16 %v72
    %v299 = vpack.c.b16 %v290, %v287
    %v300 = vpack.c.b16 %v291, %v288
    %v301 = vpack.c.b16 %v292, %v289
    %v302 = vpack.c.b16 %v296, %v293
    %v303 = vpack.c.b16 %v297, %v294
    %v304 = vpack.c.b16 %v298, %v295
    %v309 = vsel %vm139, 0, 0
    %v312 = vand.u32 %v302, %v155
    %v315 = vand.u32 %v303, %v155
    %v318 = vand.u32 %v304, %v155
    %320 = vmatpush.bf16.msra.mxu0 0
    %321 = vmatpush.bf16.msra.mxu0 0
    %322 = vmatpush.bf16.msra.mxu0 0
    %323 = vmatpush.bf16.msra.mxu0 0
    %324 = vmatpush.bf16.msra.mxu0 0
    %325 = vmatpush.bf16.msra.mxu0 0
    %326 = vmatpush.bf16.msra.mxu0 %v312
    %327 = vmatpush.bf16.msra.mxu0 %v299
    %328 = vmatmul.bf16.gmra.mxu0 %v309
    %v329 = vpop.f32.mrf.mxu0
    %v330 = vadd.f32 0.0, %v329
    %v331 = vpop.f32.mrf.mxu0
    %332 = vdwg.mxu0
    %333 = vmatpush.bf16.msra.mxu0 0
    %334 = vmatpush.bf16.msra.mxu0 0
    %335 = vmatpush.bf16.msra.mxu0 0
    %336 = vmatpush.bf16.msra.mxu0 0
    %337 = vmatpush.bf16.msra.mxu0 0
    %338 = vmatpush.bf16.msra.mxu0 0
    %339 = vmatpush.bf16.msra.mxu0 %v315
    %340 = vmatpush.bf16.msra.mxu0 %v300
    %341 = vmatmul.bf16.gmra.mxu0 %v309
    %v342 = vpop.f32.mrf.mxu0
    %v343 = vadd.f32 0.0, %v342
    %v344 = vpop.f32.mrf.mxu0
    %345 = vdwg.mxu0
    %346 = vmatpush.bf16.msra.mxu0 0
    %347 = vmatpush.bf16.msra.mxu0 0
    %348 = vmatpush.bf16.msra.mxu0 0
    %349 = vmatpush.bf16.msra.mxu0 0
    %350 = vmatpush.bf16.msra.mxu0 0
    %351 = vmatpush.bf16.msra.mxu0 0
    %352 = vmatpush.bf16.msra.mxu0 %v318
    %353 = vmatpush.bf16.msra.mxu0 %v301
    %354 = vmatmul.bf16.gmra.mxu0 %v309
    %v355 = vpop.f32.mrf.mxu0
    %v356 = vadd.f32 0.0, %v355
    %v357 = vpop.f32.mrf.mxu0
    %358 = vdwg.mxu0
    %v359 = vadd.f32 %v276, %v330
    %v360 = vxor.u32 %v359, 2147483648
    %v361 = vmul.f32 %v360, 1.442695
    %v362 = vpow.pop %v361
    %v363 = vadd.f32 %v362, 1.0
    %v364 = vrcp.pop %v363
    %v365 = vmul.f32 %v363, %v364
    %v366 = vsub.f32 1.0, %v365
    %v367 = vmul.f32 %v364, %v366
    %v368 = vadd.f32 %v364, %v367
    %vm369 = vweird.f32 %v363
    %vm370 = vweird.f32 %v364
    %vm371 = vmor %vm369, %vm370
    %v372 = vsel %vm371, %v364, %v368
    %v373 = vand.u32 2147483647, %v363
    %vm374 = vcmp.eq.f32.partialorder %v373, 8.507059e+37
    %v375 = vand.u32 %v363, 2147483648
    %v376 = vor.u32 1.1754944e-38, %v375
    %v377 = vsel %vm374, %v376, %v372
    %v378 = vmul.f32 1.0, %v377
    %v379 = vadd.f32 %v277, %v343
    %v380 = vxor.u32 %v379, 2147483648
    %v381 = vmul.f32 %v380, 1.442695
    %v382 = vpow.pop %v381
    %v383 = vadd.f32 %v382, 1.0
    %v384 = vrcp.pop %v383
    %v385 = vmul.f32 %v383, %v384
    %v386 = vsub.f32 1.0, %v385
    %v387 = vmul.f32 %v384, %v386
    %v388 = vadd.f32 %v384, %v387
    %vm389 = vweird.f32 %v383
    %vm390 = vweird.f32 %v384
    %vm391 = vmor %vm389, %vm390
    %v392 = vsel %vm391, %v384, %v388
    %v393 = vand.u32 2147483647, %v383
    %vm394 = vcmp.eq.f32.partialorder %v393, 8.507059e+37
    %v395 = vand.u32 %v383, 2147483648
    %v396 = vor.u32 1.1754944e-38, %v395
    %v397 = vsel %vm394, %v396, %v392
    %v398 = vmul.f32 1.0, %v397
    %v400 = vperm.slane %v74, 0
    %v402 = vadd.f32 %v356, %v400
    %v403 = vmul.f32 %v378, %v402
    %v404 = vadd.f32 %v278, %v403
    %v405 = vtanh.pop %v404
    %v406 = vsub.f32 1.0, %v398
    %v407 = vmul.f32 %v406, %v405
    %v408 = vmul.f32 %v398, 0.0
    %v409 = vadd.f32 %v407, %v408
    %410 = vst.msk [vmem:[%s9] sm:$0xff] %vm139, %v409
    %v411 = vld [vmem:[#allocation2 + $0x18] sm:$0xff]
    %v412 = vld [vmem:[#allocation2 + $0x20] sm:$0xff]
    %v413 = vld [vmem:[#allocation2 + $0x28] sm:$0xff]
    %v414 = vpack.c.bf16 %v409, %v409
    %v416 = vsel %vm139, %v414, 0
    %418 = vmatpush.bf16.msra.mxu0 0
    %419 = vmatpush.bf16.msra.mxu0 0
    %420 = vmatpush.bf16.msra.mxu0 0
    %421 = vmatpush.bf16.msra.mxu0 0
    %422 = vmatpush.bf16.msra.mxu0 0
    %423 = vmatpush.bf16.msra.mxu0 0
    %424 = vmatpush.bf16.msra.mxu0 %v312
    %425 = vmatpush.bf16.msra.mxu0 %v299
    %426 = vmatmul.bf16.gmra.mxu0 %v416
    %v427 = vpop.f32.mrf.mxu0
    %v428 = vadd.f32 0.0, %v427
    %v429 = vpop.f32.mrf.mxu0
    %430 = vdwg.mxu0
    %431 = vmatpush.bf16.msra.mxu0 0
    %432 = vmatpush.bf16.msra.mxu0 0
    %433 = vmatpush.bf16.msra.mxu0 0
    %434 = vmatpush.bf16.msra.mxu0 0
    %435 = vmatpush.bf16.msra.mxu0 0
    %436 = vmatpush.bf16.msra.mxu0 0
    %437 = vmatpush.bf16.msra.mxu0 %v315
    %438 = vmatpush.bf16.msra.mxu0 %v300
    %439 = vmatmul.bf16.gmra.mxu0 %v416
    %v440 = vpop.f32.mrf.mxu0
    %v441 = vadd.f32 0.0, %v440
    %v442 = vpop.f32.mrf.mxu0
    %443 = vdwg.mxu0
    %444 = vmatpush.bf16.msra.mxu0 0
    %445 = vmatpush.bf16.msra.mxu0 0
    %446 = vmatpush.bf16.msra.mxu0 0
    %447 = vmatpush.bf16.msra.mxu0 0
    %448 = vmatpush.bf16.msra.mxu0 0
    %449 = vmatpush.bf16.msra.mxu0 0
    %450 = vmatpush.bf16.msra.mxu0 %v318
    %451 = vmatpush.bf16.msra.mxu0 %v301
    %452 = vmatmul.bf16.gmra.mxu0 %v416
    %v453 = vpop.f32.mrf.mxu0
    %v454 = vadd.f32 0.0, %v453
    %v455 = vpop.f32.mrf.mxu0
    %456 = vdwg.mxu0
    %v457 = vadd.f32 %v411, %v428
    %v458 = vxor.u32 %v457, 2147483648
    %v459 = vmul.f32 %v458, 1.442695
    %v460 = vpow.pop %v459
    %v461 = vadd.f32 %v460, 1.0
    %v462 = vrcp.pop %v461
    %v463 = vmul.f32 %v461, %v462
    %v464 = vsub.f32 1.0, %v463
    %v465 = vmul.f32 %v462, %v464
    %v466 = vadd.f32 %v462, %v465
    %vm467 = vweird.f32 %v461
    %vm468 = vweird.f32 %v462
    %vm469 = vmor %vm467, %vm468
    %v470 = vsel %vm469, %v462, %v466
    %v471 = vand.u32 2147483647, %v461
    %vm472 = vcmp.eq.f32.partialorder %v471, 8.507059e+37
    %v473 = vand.u32 %v461, 2147483648
    %v474 = vor.u32 1.1754944e-38, %v473
    %v475 = vsel %vm472, %v474, %v470
    %v476 = vmul.f32 1.0, %v475
    %v477 = vadd.f32 %v412, %v441
    %v478 = vxor.u32 %v477, 2147483648
    %v479 = vmul.f32 %v478, 1.442695
    %v480 = vpow.pop %v479
    %v481 = vadd.f32 %v480, 1.0
    %v482 = vrcp.pop %v481
    %v483 = vmul.f32 %v481, %v482
    %v484 = vsub.f32 1.0, %v483
    %v485 = vmul.f32 %v482, %v484
    %v486 = vadd.f32 %v482, %v485
    %vm487 = vweird.f32 %v481
    %vm488 = vweird.f32 %v482
    %vm489 = vmor %vm487, %vm488
    %v490 = vsel %vm489, %v482, %v486
    %v491 = vand.u32 2147483647, %v481
    %vm492 = vcmp.eq.f32.partialorder %v491, 8.507059e+37
    %v493 = vand.u32 %v481, 2147483648
    %v494 = vor.u32 1.1754944e-38, %v493
    %v495 = vsel %vm492, %v494, %v490
    %v496 = vmul.f32 1.0, %v495
    %v497 = vadd.f32 %v454, %v400
    %v498 = vmul.f32 %v476, %v497
    %v499 = vadd.f32 %v413, %v498
    %v500 = vtanh.pop %v499
    %v501 = vsub.f32 1.0, %v496
    %v502 = vmul.f32 %v501, %v500
    %v503 = vmul.f32 %v496, %v409
    %v504 = vadd.f32 %v502, %v503
    %505 = vst.msk [vmem:[%s9 + $0x8] sm:$0xff] %vm139, %v504
    %v506 = vld [vmem:[#allocation2 + $0x30] sm:$0xff]
    %v507 = vld [vmem:[#allocation2 + $0x38] sm:$0xff]
    %v508 = vld [vmem:[#allocation2 + $0x40] sm:$0xff]
    %v509 = vpack.c.bf16 %v504, %v504
    %v511 = vsel %vm139, %v509, 0
    %513 = vmatpush.bf16.msra.mxu0 0
    %514 = vmatpush.bf16.msra.mxu0 0
    %515 = vmatpush.bf16.msra.mxu0 0
    %516 = vmatpush.bf16.msra.mxu0 0
    %517 = vmatpush.bf16.msra.mxu0 0
    %518 = vmatpush.bf16.msra.mxu0 0
    %519 = vmatpush.bf16.msra.mxu0 %v312
    %520 = vmatpush.bf16.msra.mxu0 %v299
    %521 = vmatmul.bf16.gmra.mxu0 %v511
    %v522 = vpop.f32.mrf.mxu0
    %v523 = vadd.f32 0.0, %v522
    %v524 = vpop.f32.mrf.mxu0
    %525 = vdwg.mxu0
    %526 = vmatpush.bf16.msra.mxu0 0
    %527 = vmatpush.bf16.msra.mxu0 0
    %528 = vmatpush.bf16.msra.mxu0 0
    %529 = vmatpush.bf16.msra.mxu0 0
    %530 = vmatpush.bf16.msra.mxu0 0
    %531 = vmatpush.bf16.msra.mxu0 0
    %532 = vmatpush.bf16.msra.mxu0 %v315
    %533 = vmatpush.bf16.msra.mxu0 %v300
    %534 = vmatmul.bf16.gmra.mxu0 %v511
    %v535 = vpop.f32.mrf.mxu0
    %v536 = vadd.f32 0.0, %v535
    %v537 = vpop.f32.mrf.mxu0
    %538 = vdwg.mxu0
    %539 = vmatpush.bf16.msra.mxu0 0
    %540 = vmatpush.bf16.msra.mxu0 0
    %541 = vmatpush.bf16.msra.mxu0 0
    %542 = vmatpush.bf16.msra.mxu0 0
    %543 = vmatpush.bf16.msra.mxu0 0
    %544 = vmatpush.bf16.msra.mxu0 0
    %545 = vmatpush.bf16.msra.mxu0 %v318
    %546 = vmatpush.bf16.msra.mxu0 %v301
    %547 = vmatmul.bf16.gmra.mxu0 %v511
    %v548 = vpop.f32.mrf.mxu0
    %v549 = vadd.f32 0.0, %v548
    %v550 = vpop.f32.mrf.mxu0
    %551 = vdwg.mxu0
    %v552 = vadd.f32 %v506, %v523
    %v553 = vxor.u32 %v552, 2147483648
    %v554 = vmul.f32 %v553, 1.442695
    %v555 = vpow.pop %v554
    %v556 = vadd.f32 %v555, 1.0
    %v557 = vrcp.pop %v556
    %v558 = vmul.f32 %v556, %v557
    %v559 = vsub.f32 1.0, %v558
    %v560 = vmul.f32 %v557, %v559
    %v561 = vadd.f32 %v557, %v560
    %vm562 = vweird.f32 %v556
    %vm563 = vweird.f32 %v557
    %vm564 = vmor %vm562, %vm563
    %v565 = vsel %vm564, %v557, %v561
    %v566 = vand.u32 2147483647, %v556
    %vm567 = vcmp.eq.f32.partialorder %v566, 8.507059e+37
    %v568 = vand.u32 %v556, 2147483648
    %v569 = vor.u32 1.1754944e-38, %v568
    %v570 = vsel %vm567, %v569, %v565
    %v571 = vmul.f32 1.0, %v570
    %v572 = vadd.f32 %v507, %v536
    %v573 = vxor.u32 %v572, 2147483648
    %v574 = vmul.f32 %v573, 1.442695
    %v575 = vpow.pop %v574
    %v576 = vadd.f32 %v575, 1.0
    %v577 = vrcp.pop %v576
    %v578 = vmul.f32 %v576, %v577
    %v579 = vsub.f32 1.0, %v578
    %v580 = vmul.f32 %v577, %v579
    %v581 = vadd.f32 %v577, %v580
    %vm582 = vweird.f32 %v576
    %vm583 = vweird.f32 %v577
    %vm584 = vmor %vm582, %vm583
    %v585 = vsel %vm584, %v577, %v581
    %v586 = vand.u32 2147483647, %v576
    %vm587 = vcmp.eq.f32.partialorder %v586, 8.507059e+37
    %v588 = vand.u32 %v576, 2147483648
    %v589 = vor.u32 1.1754944e-38, %v588
    %v590 = vsel %vm587, %v589, %v585
    %v591 = vmul.f32 1.0, %v590
    %v592 = vadd.f32 %v549, %v400
    %v593 = vmul.f32 %v571, %v592
    %v594 = vadd.f32 %v508, %v593
    %v595 = vtanh.pop %v594
    %v596 = vsub.f32 1.0, %v591
    %v597 = vmul.f32 %v596, %v595
    %v598 = vmul.f32 %v591, %v504
    %v599 = vadd.f32 %v597, %v598
    %600 = vst.msk [vmem:[%s9 + $0x10] sm:$0xff] %vm139, %v599
    %v601 = vld [vmem:[#allocation2 + $0x48] sm:$0xff]
    %v602 = vld [vmem:[#allocation2 + $0x50] sm:$0xff]
    %v603 = vld [vmem:[#allocation2 + $0x58] sm:$0xff]
    %v604 = vpack.c.bf16 %v599, %v599
    %v606 = vsel %vm139, %v604, 0
    %608 = vmatpush.bf16.msra.mxu0 0
    %609 = vmatpush.bf16.msra.mxu0 0
    %610 = vmatpush.bf16.msra.mxu0 0
    %611 = vmatpush.bf16.msra.mxu0 0
    %612 = vmatpush.bf16.msra.mxu0 0
    %613 = vmatpush.bf16.msra.mxu0 0
    %614 = vmatpush.bf16.msra.mxu0 %v312
    %615 = vmatpush.bf16.msra.mxu0 %v299
    %616 = vmatmul.bf16.gmra.mxu0 %v606
    %v617 = vpop.f32.mrf.mxu0
    %v618 = vadd.f32 0.0, %v617
    %v619 = vpop.f32.mrf.mxu0
    %620 = vdwg.mxu0
    %621 = vmatpush.bf16.msra.mxu0 0
    %622 = vmatpush.bf16.msra.mxu0 0
    %623 = vmatpush.bf16.msra.mxu0 0
    %624 = vmatpush.bf16.msra.mxu0 0
    %625 = vmatpush.bf16.msra.mxu0 0
    %626 = vmatpush.bf16.msra.mxu0 0
    %627 = vmatpush.bf16.msra.mxu0 %v315
    %628 = vmatpush.bf16.msra.mxu0 %v300
    %629 = vmatmul.bf16.gmra.mxu0 %v606
    %v630 = vpop.f32.mrf.mxu0
    %v631 = vadd.f32 0.0, %v630
    %v632 = vpop.f32.mrf.mxu0
    %633 = vdwg.mxu0
    %634 = vmatpush.bf16.msra.mxu0 0
    %635 = vmatpush.bf16.msra.mxu0 0
    %636 = vmatpush.bf16.msra.mxu0 0
    %637 = vmatpush.bf16.msra.mxu0 0
    %638 = vmatpush.bf16.msra.mxu0 0
    %639 = vmatpush.bf16.msra.mxu0 0
    %640 = vmatpush.bf16.msra.mxu0 %v318
    %641 = vmatpush.bf16.msra.mxu0 %v301
    %642 = vmatmul.bf16.gmra.mxu0 %v606
    %v643 = vpop.f32.mrf.mxu0
    %v644 = vadd.f32 0.0, %v643
    %v645 = vpop.f32.mrf.mxu0
    %646 = vdwg.mxu0
    %v647 = vadd.f32 %v601, %v618
    %v648 = vxor.u32 %v647, 2147483648
    %v649 = vmul.f32 %v648, 1.442695
    %v650 = vpow.pop %v649
    %v651 = vadd.f32 %v650, 1.0
    %v652 = vrcp.pop %v651
    %v653 = vmul.f32 %v651, %v652
    %v654 = vsub.f32 1.0, %v653
    %v655 = vmul.f32 %v652, %v654
    %v656 = vadd.f32 %v652, %v655
    %vm657 = vweird.f32 %v651
    %vm658 = vweird.f32 %v652
    %vm659 = vmor %vm657, %vm658
    %v660 = vsel %vm659, %v652, %v656
    %v661 = vand.u32 2147483647, %v651
    %vm662 = vcmp.eq.f32.partialorder %v661, 8.507059e+37
    %v663 = vand.u32 %v651, 2147483648
    %v664 = vor.u32 1.1754944e-38, %v663
    %v665 = vsel %vm662, %v664, %v660
    %v666 = vmul.f32 1.0, %v665
    %v667 = vadd.f32 %v602, %v631
    %v668 = vxor.u32 %v667, 2147483648
    %v669 = vmul.f32 %v668, 1.442695
    %v670 = vpow.pop %v669
    %v671 = vadd.f32 %v670, 1.0
    %v672 = vrcp.pop %v671
    %v673 = vmul.f32 %v671, %v672
    %v674 = vsub.f32 1.0, %v673
    %v675 = vmul.f32 %v672, %v674
    %v676 = vadd.f32 %v672, %v675
    %vm677 = vweird.f32 %v671
    %vm678 = vweird.f32 %v672
    %vm679 = vmor %vm677, %vm678
    %v680 = vsel %vm679, %v672, %v676
    %v681 = vand.u32 2147483647, %v671
    %vm682 = vcmp.eq.f32.partialorder %v681, 8.507059e+37
    %v683 = vand.u32 %v671, 2147483648
    %v684 = vor.u32 1.1754944e-38, %v683
    %v685 = vsel %vm682, %v684, %v680
    %v686 = vmul.f32 1.0, %v685
    %v687 = vadd.f32 %v644, %v400
    %v688 = vmul.f32 %v666, %v687
    %v689 = vadd.f32 %v603, %v688
    %v690 = vtanh.pop %v689
    %v691 = vsub.f32 1.0, %v686
    %v692 = vmul.f32 %v691, %v690
    %v693 = vmul.f32 %v686, %v599
    %v694 = vadd.f32 %v692, %v693
    %695 = vst.msk [vmem:[%s9 + $0x18] sm:$0xff] %vm139, %v694
    %v696 = vld [vmem:[#allocation2 + $0x60] sm:$0xff]
    %v697 = vld [vmem:[#allocation2 + $0x68] sm:$0xff]
    %v698 = vld [vmem:[#allocation2 + $0x70] sm:$0xff]
    %v699 = vpack.c.bf16 %v694, %v694
    %v701 = vsel %vm139, %v699, 0
    %703 = vmatpush.bf16.msra.mxu0 0
    %704 = vmatpush.bf16.msra.mxu0 0
    %705 = vmatpush.bf16.msra.mxu0 0
    %706 = vmatpush.bf16.msra.mxu0 0
    %707 = vmatpush.bf16.msra.mxu0 0
    %708 = vmatpush.bf16.msra.mxu0 0
    %709 = vmatpush.bf16.msra.mxu0 %v312
    %710 = vmatpush.bf16.msra.mxu0 %v299
    %711 = vmatmul.bf16.gmra.mxu0 %v701
    %v712 = vpop.f32.mrf.mxu0
    %v713 = vadd.f32 0.0, %v712
    %v714 = vpop.f32.mrf.mxu0
    %715 = vdwg.mxu0
    %716 = vmatpush.bf16.msra.mxu0 0
    %717 = vmatpush.bf16.msra.mxu0 0
    %718 = vmatpush.bf16.msra.mxu0 0
    %719 = vmatpush.bf16.msra.mxu0 0
    %720 = vmatpush.bf16.msra.mxu0 0
    %721 = vmatpush.bf16.msra.mxu0 0
    %722 = vmatpush.bf16.msra.mxu0 %v315
    %723 = vmatpush.bf16.msra.mxu0 %v300
    %724 = vmatmul.bf16.gmra.mxu0 %v701
    %v725 = vpop.f32.mrf.mxu0
    %v726 = vadd.f32 0.0, %v725
    %v727 = vpop.f32.mrf.mxu0
    %728 = vdwg.mxu0
    %729 = vmatpush.bf16.msra.mxu0 0
    %730 = vmatpush.bf16.msra.mxu0 0
    %731 = vmatpush.bf16.msra.mxu0 0
    %732 = vmatpush.bf16.msra.mxu0 0
    %733 = vmatpush.bf16.msra.mxu0 0
    %734 = vmatpush.bf16.msra.mxu0 0
    %735 = vmatpush.bf16.msra.mxu0 %v318
    %736 = vmatpush.bf16.msra.mxu0 %v301
    %737 = vmatmul.bf16.gmra.mxu0 %v701
    %v738 = vpop.f32.mrf.mxu0
    %v739 = vadd.f32 0.0, %v738
    %v740 = vpop.f32.mrf.mxu0
    %741 = vdwg.mxu0
    %v742 = vadd.f32 %v696, %v713
    %v743 = vxor.u32 %v742, 2147483648
    %v744 = vmul.f32 %v743, 1.442695
    %v745 = vpow.pop %v744
    %v746 = vadd.f32 %v745, 1.0
    %v747 = vrcp.pop %v746
    %v748 = vmul.f32 %v746, %v747
    %v749 = vsub.f32 1.0, %v748
    %v750 = vmul.f32 %v747, %v749
    %v751 = vadd.f32 %v747, %v750
    %vm752 = vweird.f32 %v746
    %vm753 = vweird.f32 %v747
    %vm754 = vmor %vm752, %vm753
    %v755 = vsel %vm754, %v747, %v751
    %v756 = vand.u32 2147483647, %v746
    %vm757 = vcmp.eq.f32.partialorder %v756, 8.507059e+37
    %v758 = vand.u32 %v746, 2147483648
    %v759 = vor.u32 1.1754944e-38, %v758
    %v760 = vsel %vm757, %v759, %v755
    %v761 = vmul.f32 1.0, %v760
    %v762 = vadd.f32 %v697, %v726
    %v763 = vxor.u32 %v762, 2147483648
    %v764 = vmul.f32 %v763, 1.442695
    %v765 = vpow.pop %v764
    %v766 = vadd.f32 %v765, 1.0
    %v767 = vrcp.pop %v766
    %v768 = vmul.f32 %v766, %v767
    %v769 = vsub.f32 1.0, %v768
    %v770 = vmul.f32 %v767, %v769
    %v771 = vadd.f32 %v767, %v770
    %vm772 = vweird.f32 %v766
    %vm773 = vweird.f32 %v767
    %vm774 = vmor %vm772, %vm773
    %v775 = vsel %vm774, %v767, %v771
    %v776 = vand.u32 2147483647, %v766
    %vm777 = vcmp.eq.f32.partialorder %v776, 8.507059e+37
    %v778 = vand.u32 %v766, 2147483648
    %v779 = vor.u32 1.1754944e-38, %v778
    %v780 = vsel %vm777, %v779, %v775
    %v781 = vmul.f32 1.0, %v780
    %v782 = vadd.f32 %v739, %v400
    %v783 = vmul.f32 %v761, %v782
    %v784 = vadd.f32 %v698, %v783
    %v785 = vtanh.pop %v784
    %v786 = vsub.f32 1.0, %v781
    %v787 = vmul.f32 %v786, %v785
    %v788 = vmul.f32 %v781, %v694
    %v789 = vadd.f32 %v787, %v788
    %790 = vst.msk [vmem:[%s9 + $0x20] sm:$0xff] %vm139, %v789
    %v791 = vld [vmem:[#allocation2 + $0x78] sm:$0xff]
    %v792 = vld [vmem:[#allocation2 + $0x80] sm:$0xff]
    %v793 = vld [vmem:[#allocation2 + $0x88] sm:$0xff]
    %v794 = vpack.c.bf16 %v789, %v789
    %v796 = vsel %vm139, %v794, 0
    %798 = vmatpush.bf16.msra.mxu0 0
    %799 = vmatpush.bf16.msra.mxu0 0
    %800 = vmatpush.bf16.msra.mxu0 0
    %801 = vmatpush.bf16.msra.mxu0 0
    %802 = vmatpush.bf16.msra.mxu0 0
    %803 = vmatpush.bf16.msra.mxu0 0
    %804 = vmatpush.bf16.msra.mxu0 %v312
    %805 = vmatpush.bf16.msra.mxu0 %v299
    %806 = vmatmul.bf16.gmra.mxu0 %v796
    %v807 = vpop.f32.mrf.mxu0
    %v808 = vadd.f32 0.0, %v807
    %v809 = vpop.f32.mrf.mxu0
    %810 = vdwg.mxu0
    %811 = vmatpush.bf16.msra.mxu0 0
    %812 = vmatpush.bf16.msra.mxu0 0
    %813 = vmatpush.bf16.msra.mxu0 0
    %814 = vmatpush.bf16.msra.mxu0 0
    %815 = vmatpush.bf16.msra.mxu0 0
    %816 = vmatpush.bf16.msra.mxu0 0
    %817 = vmatpush.bf16.msra.mxu0 %v315
    %818 = vmatpush.bf16.msra.mxu0 %v300
    %819 = vmatmul.bf16.gmra.mxu0 %v796
    %v820 = vpop.f32.mrf.mxu0
    %v821 = vadd.f32 0.0, %v820
    %v822 = vpop.f32.mrf.mxu0
    %823 = vdwg.mxu0
    %824 = vmatpush.bf16.msra.mxu0 0
    %825 = vmatpush.bf16.msra.mxu0 0
    %826 = vmatpush.bf16.msra.mxu0 0
    %827 = vmatpush.bf16.msra.mxu0 0
    %828 = vmatpush.bf16.msra.mxu0 0
    %829 = vmatpush.bf16.msra.mxu0 0
    %830 = vmatpush.bf16.msra.mxu0 %v318
    %831 = vmatpush.bf16.msra.mxu0 %v301
    %832 = vmatmul.bf16.gmra.mxu0 %v796
    %v833 = vpop.f32.mrf.mxu0
    %v834 = vadd.f32 0.0, %v833
    %v835 = vpop.f32.mrf.mxu0
    %836 = vdwg.mxu0
    %v837 = vadd.f32 %v791, %v808
    %v838 = vxor.u32 %v837, 2147483648
    %v839 = vmul.f32 %v838, 1.442695
    %v840 = vpow.pop %v839
    %v841 = vadd.f32 %v840, 1.0
    %v842 = vrcp.pop %v841
    %v843 = vmul.f32 %v841, %v842
    %v844 = vsub.f32 1.0, %v843
    %v845 = vmul.f32 %v842, %v844
    %v846 = vadd.f32 %v842, %v845
    %vm847 = vweird.f32 %v841
    %vm848 = vweird.f32 %v842
    %vm849 = vmor %vm847, %vm848
    %v850 = vsel %vm849, %v842, %v846
    %v851 = vand.u32 2147483647, %v841
    %vm852 = vcmp.eq.f32.partialorder %v851, 8.507059e+37
    %v853 = vand.u32 %v841, 2147483648
    %v854 = vor.u32 1.1754944e-38, %v853
    %v855 = vsel %vm852, %v854, %v850
    %v856 = vmul.f32 1.0, %v855
    %v857 = vadd.f32 %v792, %v821
    %v858 = vxor.u32 %v857, 2147483648
    %v859 = vmul.f32 %v858, 1.442695
    %v860 = vpow.pop %v859
    %v861 = vadd.f32 %v860, 1.0
    %v862 = vrcp.pop %v861
    %v863 = vmul.f32 %v861, %v862
    %v864 = vsub.f32 1.0, %v863
    %v865 = vmul.f32 %v862, %v864
    %v866 = vadd.f32 %v862, %v865
    %vm867 = vweird.f32 %v861
    %vm868 = vweird.f32 %v862
    %vm869 = vmor %vm867, %vm868
    %v870 = vsel %vm869, %v862, %v866
    %v871 = vand.u32 2147483647, %v861
    %vm872 = vcmp.eq.f32.partialorder %v871, 8.507059e+37
    %v873 = vand.u32 %v861, 2147483648
    %v874 = vor.u32 1.1754944e-38, %v873
    %v875 = vsel %vm872, %v874, %v870
    %v876 = vmul.f32 1.0, %v875
    %v877 = vadd.f32 %v834, %v400
    %v878 = vmul.f32 %v856, %v877
    %v879 = vadd.f32 %v793, %v878
    %v880 = vtanh.pop %v879
    %v881 = vsub.f32 1.0, %v876
    %v882 = vmul.f32 %v881, %v880
    %v883 = vmul.f32 %v876, %v789
    %v884 = vadd.f32 %v882, %v883
    %885 = vst.msk [vmem:[%s9 + $0x28] sm:$0xff] %vm139, %v884
    %v886 = vld [vmem:[#allocation2 + $0x90] sm:$0xff]
    %v887 = vld [vmem:[#allocation2 + $0x98] sm:$0xff]
    %v888 = vld [vmem:[#allocation2 + $0xa0] sm:$0xff]
    %v889 = vpack.c.bf16 %v884, %v884
    %v891 = vsel %vm139, %v889, 0
    %893 = vmatpush.bf16.msra.mxu0 0
    %894 = vmatpush.bf16.msra.mxu0 0
    %895 = vmatpush.bf16.msra.mxu0 0
    %896 = vmatpush.bf16.msra.mxu0 0
    %897 = vmatpush.bf16.msra.mxu0 0
    %898 = vmatpush.bf16.msra.mxu0 0
    %899 = vmatpush.bf16.msra.mxu0 %v312
    %900 = vmatpush.bf16.msra.mxu0 %v299
    %901 = vmatmul.bf16.gmra.mxu0 %v891
    %v902 = vpop.f32.mrf.mxu0
    %v903 = vadd.f32 0.0, %v902
    %v904 = vpop.f32.mrf.mxu0
    %905 = vdwg.mxu0
    %906 = vmatpush.bf16.msra.mxu0 0
    %907 = vmatpush.bf16.msra.mxu0 0
    %908 = vmatpush.bf16.msra.mxu0 0
    %909 = vmatpush.bf16.msra.mxu0 0
    %910 = vmatpush.bf16.msra.mxu0 0
    %911 = vmatpush.bf16.msra.mxu0 0
    %912 = vmatpush.bf16.msra.mxu0 %v315
    %913 = vmatpush.bf16.msra.mxu0 %v300
    %914 = vmatmul.bf16.gmra.mxu0 %v891
    %v915 = vpop.f32.mrf.mxu0
    %v916 = vadd.f32 0.0, %v915
    %v917 = vpop.f32.mrf.mxu0
    %918 = vdwg.mxu0
    %919 = vmatpush.bf16.msra.mxu0 0
    %920 = vmatpush.bf16.msra.mxu0 0
    %921 = vmatpush.bf16.msra.mxu0 0
    %922 = vmatpush.bf16.msra.mxu0 0
    %923 = vmatpush.bf16.msra.mxu0 0
    %924 = vmatpush.bf16.msra.mxu0 0
    %925 = vmatpush.bf16.msra.mxu0 %v318
    %926 = vmatpush.bf16.msra.mxu0 %v301
    %927 = vmatmul.bf16.gmra.mxu0 %v891
    %v928 = vpop.f32.mrf.mxu0
    %v929 = vadd.f32 0.0, %v928
    %v930 = vpop.f32.mrf.mxu0
    %931 = vdwg.mxu0
    %v932 = vadd.f32 %v886, %v903
    %v933 = vxor.u32 %v932, 2147483648
    %v934 = vmul.f32 %v933, 1.442695
    %v935 = vpow.pop %v934
    %v936 = vadd.f32 %v935, 1.0
    %v937 = vrcp.pop %v936
    %v938 = vmul.f32 %v936, %v937
    %v939 = vsub.f32 1.0, %v938
    %v940 = vmul.f32 %v937, %v939
    %v941 = vadd.f32 %v937, %v940
    %vm942 = vweird.f32 %v936
    %vm943 = vweird.f32 %v937
    %vm944 = vmor %vm942, %vm943
    %v945 = vsel %vm944, %v937, %v941
    %v946 = vand.u32 2147483647, %v936
    %vm947 = vcmp.eq.f32.partialorder %v946, 8.507059e+37
    %v948 = vand.u32 %v936, 2147483648
    %v949 = vor.u32 1.1754944e-38, %v948
    %v950 = vsel %vm947, %v949, %v945
    %v951 = vmul.f32 1.0, %v950
    %v952 = vadd.f32 %v887, %v916
    %v953 = vxor.u32 %v952, 2147483648
    %v954 = vmul.f32 %v953, 1.442695
    %v955 = vpow.pop %v954
    %v956 = vadd.f32 %v955, 1.0
    %v957 = vrcp.pop %v956
    %v958 = vmul.f32 %v956, %v957
    %v959 = vsub.f32 1.0, %v958
    %v960 = vmul.f32 %v957, %v959
    %v961 = vadd.f32 %v957, %v960
    %vm962 = vweird.f32 %v956
    %vm963 = vweird.f32 %v957
    %vm964 = vmor %vm962, %vm963
    %v965 = vsel %vm964, %v957, %v961
    %v966 = vand.u32 2147483647, %v956
    %vm967 = vcmp.eq.f32.partialorder %v966, 8.507059e+37
    %v968 = vand.u32 %v956, 2147483648
    %v969 = vor.u32 1.1754944e-38, %v968
    %v970 = vsel %vm967, %v969, %v965
    %v971 = vmul.f32 1.0, %v970
    %v972 = vadd.f32 %v929, %v400
    %v973 = vmul.f32 %v951, %v972
    %v974 = vadd.f32 %v888, %v973
    %v975 = vtanh.pop %v974
    %v976 = vsub.f32 1.0, %v971
    %v977 = vmul.f32 %v976, %v975
    %v978 = vmul.f32 %v971, %v884
    %v979 = vadd.f32 %v977, %v978
    %980 = vst.msk [vmem:[%s9 + $0x30] sm:$0xff] %vm139, %v979
    %v981 = vld [vmem:[#allocation2 + $0xa8] sm:$0xff]
    %v982 = vld [vmem:[#allocation2 + $0xb0] sm:$0xff]
    %v983 = vld [vmem:[#allocation2 + $0xb8] sm:$0xff]
    %v984 = vpack.c.bf16 %v979, %v979
    %v986 = vsel %vm139, %v984, 0
    %988 = vmatpush.bf16.msra.mxu0 0
    %989 = vmatpush.bf16.msra.mxu0 0
    %990 = vmatpush.bf16.msra.mxu0 0
    %991 = vmatpush.bf16.msra.mxu0 0
    %992 = vmatpush.bf16.msra.mxu0 0
    %993 = vmatpush.bf16.msra.mxu0 0
    %994 = vmatpush.bf16.msra.mxu0 %v312
    %995 = vmatpush.bf16.msra.mxu0 %v299
    %996 = vmatmul.bf16.gmra.mxu0 %v986
    %v997 = vpop.f32.mrf.mxu0
    %v998 = vadd.f32 0.0, %v997
    %v999 = vpop.f32.mrf.mxu0
    %1000 = vdwg.mxu0
    %1001 = vmatpush.bf16.msra.mxu0 0
    %1002 = vmatpush.bf16.msra.mxu0 0
    %1003 = vmatpush.bf16.msra.mxu0 0
    %1004 = vmatpush.bf16.msra.mxu0 0
    %1005 = vmatpush.bf16.msra.mxu0 0
    %1006 = vmatpush.bf16.msra.mxu0 0
    %1007 = vmatpush.bf16.msra.mxu0 %v315
    %1008 = vmatpush.bf16.msra.mxu0 %v300
    %1009 = vmatmul.bf16.gmra.mxu0 %v986
    %v1010 = vpop.f32.mrf.mxu0
    %v1011 = vadd.f32 0.0, %v1010
    %v1012 = vpop.f32.mrf.mxu0
    %1013 = vdwg.mxu0
    %1014 = vmatpush.bf16.msra.mxu0 0
    %1015 = vmatpush.bf16.msra.mxu0 0
    %1016 = vmatpush.bf16.msra.mxu0 0
    %1017 = vmatpush.bf16.msra.mxu0 0
    %1018 = vmatpush.bf16.msra.mxu0 0
    %1019 = vmatpush.bf16.msra.mxu0 0
    %1020 = vmatpush.bf16.msra.mxu0 %v318
    %1021 = vmatpush.bf16.msra.mxu0 %v301
    %1022 = vmatmul.bf16.gmra.mxu0 %v986
    %v1023 = vpop.f32.mrf.mxu0
    %v1024 = vadd.f32 0.0, %v1023
    %v1025 = vpop.f32.mrf.mxu0
    %1026 = vdwg.mxu0
    %v1027 = vadd.f32 %v981, %v998
    %v1028 = vxor.u32 %v1027, 2147483648
    %v1029 = vmul.f32 %v1028, 1.442695
    %v1030 = vpow.pop %v1029
    %v1031 = vadd.f32 %v1030, 1.0
    %v1032 = vrcp.pop %v1031
    %v1033 = vmul.f32 %v1031, %v1032
    %v1034 = vsub.f32 1.0, %v1033
    %v1035 = vmul.f32 %v1032, %v1034
    %v1036 = vadd.f32 %v1032, %v1035
    %vm1037 = vweird.f32 %v1031
    %vm1038 = vweird.f32 %v1032
    %vm1039 = vmor %vm1037, %vm1038
    %v1040 = vsel %vm1039, %v1032, %v1036
    %v1041 = vand.u32 2147483647, %v1031
    %vm1042 = vcmp.eq.f32.partialorder %v1041, 8.507059e+37
    %v1043 = vand.u32 %v1031, 2147483648
    %v1044 = vor.u32 1.1754944e-38, %v1043
    %v1045 = vsel %vm1042, %v1044, %v1040
    %v1046 = vmul.f32 1.0, %v1045
    %v1047 = vadd.f32 %v982, %v1011
    %v1048 = vxor.u32 %v1047, 2147483648
    %v1049 = vmul.f32 %v1048, 1.442695
    %v1050 = vpow.pop %v1049
    %v1051 = vadd.f32 %v1050, 1.0
    %v1052 = vrcp.pop %v1051
    %v1053 = vmul.f32 %v1051, %v1052
    %v1054 = vsub.f32 1.0, %v1053
    %v1055 = vmul.f32 %v1052, %v1054
    %v1056 = vadd.f32 %v1052, %v1055
    %vm1057 = vweird.f32 %v1051
    %vm1058 = vweird.f32 %v1052
    %vm1059 = vmor %vm1057, %vm1058
    %v1060 = vsel %vm1059, %v1052, %v1056
    %v1061 = vand.u32 2147483647, %v1051
    %vm1062 = vcmp.eq.f32.partialorder %v1061, 8.507059e+37
    %v1063 = vand.u32 %v1051, 2147483648
    %v1064 = vor.u32 1.1754944e-38, %v1063
    %v1065 = vsel %vm1062, %v1064, %v1060
    %v1066 = vmul.f32 1.0, %v1065
    %v1067 = vadd.f32 %v1024, %v400
    %v1068 = vmul.f32 %v1046, %v1067
    %v1069 = vadd.f32 %v983, %v1068
    %v1070 = vtanh.pop %v1069
    %v1071 = vsub.f32 1.0, %v1066
    %v1072 = vmul.f32 %v1071, %v1070
    %v1073 = vmul.f32 %v1066, %v979
    %v1074 = vadd.f32 %v1072, %v1073
    %1075 = vst.msk [vmem:[%s9 + $0x38] sm:$0xff] %vm139, %v1074
    %v1076 = vld [vmem:[%s5] sm:$0xff]
    %v1077 = vld [vmem:[%s5 + $0x8] sm:$0xff]
    %v1078 = vld [vmem:[%s5 + $0x10] sm:$0xff]
    %v1079 = vld [vmem:[%s5 + $0x18] sm:$0x1]
    %v1080 = vld [vmem:[#allocation3] sm:$0x1]
    %v1082 = vperm.slane %v1080, 0
    %v1085 = vsel %vm139, %v1074, 0
    %vm1087 = vcmask 1040384
    %v1089 = vsel %vm1087, %v1079, 0
    %1091 = vmatpush.msra.mxu0 0.0
    %1092 = vmatpush.msra.mxu0 0.0
    %1093 = vmatpush.msra.mxu0 0.0
    %1094 = vmatpush.msra.mxu0 0.0
    %1095 = vmatpush.msra.mxu0 0.0
    %1096 = vmatpush.msra.mxu0 0.0
    %1097 = vmatpush.msra.mxu0 0.0
    %1098 = vmatpush.msra.mxu0 0.0
    %1099 = vmatpush.msra.mxu0 0.0
    %1100 = vmatpush.msra.mxu0 0.0
    %1101 = vmatpush.msra.mxu0 0.0
    %1102 = vmatpush.msra.mxu0 0.0
    %1103 = vmatpush.msra.mxu0 %v1089
    %1104 = vmatpush.msra.mxu0 %v1078
    %1105 = vmatpush.msra.mxu0 %v1077
    %1106 = vmatpush.msra.mxu0 %v1076
    %1107 = vmatmul.f32.gmra.mxu0 %v1085
    %v1108 = vpop.f32.mrf.mxu0
    %v1109 = vadd.f32 %v1082, %v1108
    %1110 = vdwg.mxu0
    %v1111 = vld [vmem:[%s7] sm:$0xff]
    %v1112 = vld [vmem:[%s8] sm:$0xff]
    %v1113 = vmax.f32 %v1109, 0.0
    %v1114 = vmul.f32 %v1109, %v1111
    %v1115 = vsub.f32 %v1113, %v1114
    %v1116 = vand.u32 2147483647, %v1109
    %v1117 = vsub.f32 0.0, %v1116
    %v1118 = vmul.f32 %v1117, 1.442695
    %v1119 = vpow.pop %v1118
    %v1120 = vadd.f32 %v1119, 1.0
    %v1121 = vlog2.pop %v1120
    %v1122 = vmul.f32 %v1121, 0.6931472
    %v1123 = vmul.f32 -0.5, %v1119
    %v1124 = vadd.f32 %v1123, 1.0
    %v1125 = vmul.f32 %v1124, %v1119
    %v1126 = vand.u32 2147483647, %v1119
    %vm1127 = vcmp.lt.f32.partialorder %v1126, 0.0004427343
    %v1128 = vsel %vm1127, %v1125, %v1122
    %v1129 = vadd.f32 %v1115, %v1128
    %vm1130 = vcmp.gt.f32.partialorder %v1109, 0.0
    %v1131 = vsel %vm1130, 1, 0
    %v1132 = vcvt.s32.f32 %v1131
    %vm1133 = vcmp.eq.f32.partialorder %v1132, %v1111
    %v1134 = vsel %vm1133, 1, 0
    %v1135 = vcvt.s32.f32 %v1134
    %vm1136 = vcmp.gt.f32.partialorder %v1112, 0.0
    %v1137 = vsel %vm1136, %v1129, 0.0
    %vm1138 = vcmask 7168
    %v1139 = vsel %vm1138, %v1137, 0.0
    %1140 = vadd.xlane.f32.xlu0 %v1139
    %v1141 = vpop.xlane.xlu0 %1140
    %v1142 = vrot.slane %v1141, 4
    %v1143 = vadd.f32 %v1141, %v1142
    %v1144 = vrot.slane %v1143, 2
    %v1145 = vadd.f32 %v1143, %v1144
    %v1146 = vrot.slane %v1145, 1
    %v1147 = vadd.f32 %v1145, %v1146
    %s1148 = vtos %v1147
    %v1149 = vstv %s1148
    %vm1150 = vcmask 0
    %1151 = vst.msk [vmem:[#allocation7] sm:$0x1] %vm1150, %v1149
    %v1152 = vsel %vm1136, %v1135, 0.0
    %v1153 = vsel %vm1138, %v1152, 0.0
    %1154 = vadd.xlane.f32.xlu0 %v1153
    %v1155 = vpop.xlane.xlu0 %1154
    %v1156 = vrot.slane %v1155, 4
    %v1157 = vadd.f32 %v1155, %v1156
    %v1158 = vrot.slane %v1157, 2
    %v1159 = vadd.f32 %v1157, %v1158
    %v1160 = vrot.slane %v1159, 1
    %v1161 = vadd.f32 %v1159, %v1160
    %s1162 = vtos %v1161
    %v1163 = vstv %s1162
    %1164 = vst.msk [vmem:[#allocation8] sm:$0x1] %vm1150, %v1163
    %v1165 = vsel %vm1138, %v1112, 0.0
    %1166 = vadd.xlane.f32.xlu0 %v1165
    %v1167 = vpop.xlane.xlu0 %1166
    %v1168 = vrot.slane %v1167, 4
    %v1169 = vadd.f32 %v1167, %v1168
    %v1170 = vrot.slane %v1169, 2
    %v1171 = vadd.f32 %v1169, %v1170
    %v1172 = vrot.slane %v1171, 1
    %v1173 = vadd.f32 %v1171, %v1172
    %s1174 = vtos %v1173
    %v1175 = vstv %s1174
    %1176 = vst.msk [vmem:[#allocation10] sm:$0x1] %vm1150, %v1175
    // Predicated region
    $region42: #{tpu_custom_call.1} parent=1 // pred_check
      _
    $region43: #{tpu_custom_call.1} parent=1 // pred_check_branch
      %1178 = sbr.rel (0) target = $region45
    $region44: #{tpu_custom_call.1} parent=1 // pred_region
      _
    $region45: #{tpu_custom_call.1} parent=1 // pred_fallthru
      _
    // Predicated region
    $region46: #{tpu_custom_call.1} parent=1 // pred_check
      _
    $region47: #{tpu_custom_call.1} parent=1 // pred_check_branch
      %1180 = sbr.rel (0) target = $region49
    $region48: #{tpu_custom_call.1} parent=1 // pred_region
      %1182 = vsyncadd [#allocation6], 0
      %s1184 = sshll.u32 [#allocation7], 4
      %s1185 = int_to_ptr.vmem [resolvable:$true] %s1184
      %s1186 = sshll.u32 %s10, 4
      %s1187 = int_to_ptr.hbm [resolvable:$true] %s1186
      %1189 = dma.vmem_to_hbm [thread:$0]  %s1185, 16, %s1187, [#allocation6]
    $region49: #{tpu_custom_call.1} parent=1 // pred_fallthru
      _
    // Predicated region
    $region50: #{tpu_custom_call.1} parent=1 // pred_check
      _
    $region51: #{tpu_custom_call.1} parent=1 // pred_check_branch
      %1191 = sbr.rel (0) target = $region53
    $region52: #{tpu_custom_call.1} parent=1 // pred_region
      %1193 = vsyncadd [#allocation9], 0
      %s1195 = sshll.u32 [#allocation8], 4
      %s1196 = int_to_ptr.vmem [resolvable:$true] %s1195
      %s1197 = sshll.u32 %s11, 4
      %s1198 = int_to_ptr.hbm [resolvable:$true] %s1197
      %1200 = dma.vmem_to_hbm [thread:$0]  %s1196, 16, %s1198, [#allocation9]
    $region53: #{tpu_custom_call.1} parent=1 // pred_fallthru
      _
    // Predicated region
    $region54: #{tpu_custom_call.1} parent=1 // pred_check
      _
    $region55: #{tpu_custom_call.1} parent=1 // pred_check_branch
      %1202 = sbr.rel (0) target = $region57
    $region56: #{tpu_custom_call.1} parent=1 // pred_region
      %1204 = vsyncadd [#allocation9], 0
      %s1206 = sshll.u32 [#allocation10], 4
      %s1207 = int_to_ptr.vmem [resolvable:$true] %s1206
      %s1208 = sshll.u32 %s12, 4
      %s1209 = int_to_ptr.hbm [resolvable:$true] %s1208
      %1211 = dma.vmem_to_hbm [thread:$0]  %s1207, 16, %s1209, [#allocation9]
    $region57: #{tpu_custom_call.1} parent=1 // pred_fallthru
      _
    // Predicated region
    $region58: #{tpu_custom_call.1} parent=1 // pred_check
      _
    $region59: #{tpu_custom_call.1} parent=1 // pred_check_branch
      %1213 = sbr.rel (0) target = $region61
    $region60: #{tpu_custom_call.1} parent=1 // pred_region
      _
    $region61: #{tpu_custom_call.1} parent=1 // pred_fallthru
      _
    // Predicated region
    $region62: #{tpu_custom_call.1} parent=1 // pred_check
      _
    $region63: #{tpu_custom_call.1} parent=1 // pred_check_branch
      %1215 = sbr.rel (0) target = $region65
    $region64: #{tpu_custom_call.1} parent=1 // pred_region
      %1217 = dma.done [#allocation6], 16
    $region65: #{tpu_custom_call.1} parent=1 // pred_fallthru
      _
    // Predicated region
    $region66: #{tpu_custom_call.1} parent=1 // pred_check
      _
    $region67: #{tpu_custom_call.1} parent=1 // pred_check_branch
      %1219 = sbr.rel (0) target = $region69
    $region68: #{tpu_custom_call.1} parent=1 // pred_region
      %1221 = dma.done [#allocation9], 16
    $region69: #{tpu_custom_call.1} parent=1 // pred_fallthru
      _
    // Predicated region
    $region70: #{tpu_custom_call.1} parent=1 // pred_check
      _
    $region71: #{tpu_custom_call.1} parent=1 // pred_check_branch
      %1223 = sbr.rel (0) target = $region73
    $region72: #{tpu_custom_call.1} parent=1 // pred_region
      %1225 = dma.done [#allocation9], 16
    $region73: #{tpu_custom_call.1} parent=1 // pred_fallthru
      _
    %1226 = vsyncpa [#allocation5], 1
    %1227 = vsyncpa [#allocation6], 1
    %1228 = vsyncpa [#allocation9], 1

</llo_original>
